<compile_context>
chip_gen: v7x
topology: tpu7x:2x2x1
jax: 0.10.0
libtpu: 0.0.40
codegen_flags: <defaults>
</compile_context>

<pallas_src>
import jax
import jax.numpy as jnp
from jax.experimental import pallas as pl
from jax.experimental.pallas import tpu as pltpu


def _linear_kernel(x_ref, w_ref, b_ref, o_ref):
    # x tile: (M, K) resident; w tile: (K, tn); bias tile: (1, tn).
    o_ref[...] = (
        jnp.dot(x_ref[...], w_ref[...], preferred_element_type=jnp.float32)
        + b_ref[...]
    ).astype(o_ref.dtype)


def dropout_linear(x, weight, bias):
    """x: (..., K) f32, weight: (N, K) (PyTorch layout), bias: (N,)."""
    # Dropout(p=0.0) == identity (exact: no mask, no scaling).
    orig_shape = x.shape
    K = orig_shape[-1]
    N = weight.shape[0]
    M = 1
    for d in orig_shape[:-1]:
        M *= d

    # 128-wide N tiles: lane-dense output, 4 pipeline steps for N=512 so the
    # weight stream overlaps compute (and splits 2/2 across v7x TensorCores).
    tn = 128 if N % 128 == 0 else N

    x2d = x.reshape(M, K)
    w_kn = weight.T            # one-time layout change of a fixed parameter
    b2d = bias.reshape(1, N)

    out = pl.pallas_call(
        _linear_kernel,
        out_shape=jax.ShapeDtypeStruct((M, N), jnp.float32),
        grid_spec=pltpu.PrefetchScalarGridSpec(
            num_scalar_prefetch=0,
            grid=(N // tn,),
            in_specs=[
                # x: constant block index -> DMA'd once, resident across N.
                pl.BlockSpec((M, K), lambda j: (0, 0)),
                # weight (K, N): stream (K, tn) chunks along N.
                pl.BlockSpec((K, tn), lambda j: (0, j)),
                # bias slice for this N chunk.
                pl.BlockSpec((1, tn), lambda j: (0, j)),
            ],
            out_specs=pl.BlockSpec((M, tn), lambda j: (0, j)),
        ),
        compiler_params=pltpu.CompilerParams(
            dimension_semantics=("parallel",),
        ),
        cost_estimate=pl.CostEstimate(
            flops=2 * M * K * N,
            transcendentals=0,
            bytes_accessed=4 * (M * K + N * K + N + M * N),
        ),
    )(x2d, w_kn, b2d)

    return out.reshape(*orig_shape[:-1], N).astype(x.dtype)


if __name__ == "__main__":
    key = jax.random.PRNGKey(0)
    kx, kw, kb = jax.random.split(key, 3)

    # Shapes implied by the module's forward: [1, 14, 14, 2048] -> [1, 14, 14, 512]
    IN_FEATURES, OUT_FEATURES = 2048, 512
    x = jax.random.normal(kx, (1, 14, 14, IN_FEATURES), dtype=jnp.float32)

    # Deterministic parameter init (matches nn.Linear uniform bound 1/sqrt(fan_in)).
    bound = 1.0 / (IN_FEATURES ** 0.5)
    weight = jax.random.uniform(
        kw, (OUT_FEATURES, IN_FEATURES), minval=-bound, maxval=bound,
        dtype=jnp.float32,
    )
    bias = jax.random.uniform(
        kb, (OUT_FEATURES,), minval=-bound, maxval=bound, dtype=jnp.float32
    )

    out = dropout_linear(x, weight, bias)
    out = jax.block_until_ready(out)

    # Correctness check against plain JAX reference.
    ref = x @ weight.T + bias
    assert out.shape == (1, 14, 14, OUT_FEATURES), out.shape
    assert jnp.allclose(out, ref, atol=1e-4, rtol=1e-4)

    print("KERNEL_OK")
</pallas_src>

<mosaic_0001>
module attributes {stable_mosaic.version = 11 : i64} {
  func.func @_linear_kernel(%arg0: i32, %arg1: memref<196x2048xf32, #tpu.memory_space<vmem>>, %arg2: memref<2048x128xf32, #tpu.memory_space<vmem>>, %arg3: memref<1x128xf32, #tpu.memory_space<vmem>>, %arg4: memref<196x128xf32, #tpu.memory_space<vmem>>) attributes {dimension_semantics = [#tpu.dimension_semantics<parallel>], iteration_bounds = array<i64: 4>, scalar_prefetch = 0 : i64, scratch_operands = 0 : i64, tpu.core_type = #tpu.core_type<tc>, window_params = [{pipeline_mode = #tpu.pipeline_mode<synchronous>, transform_indices = @transform_0, window_bounds = array<i64: 196, 2048>}, {transform_indices = @transform_1, window_bounds = array<i64: 2048, 128>}, {transform_indices = @transform_2, window_bounds = array<i64: 1, 128>}, {transform_indices = @transform_3, window_bounds = array<i64: 196, 128>}]} {
    %c0 = arith.constant 0 : index
    %c0_0 = arith.constant 0 : index
    %0 = vector.load %arg1[%c0, %c0_0] : memref<196x2048xf32, #tpu.memory_space<vmem>>, vector<196x2048xf32>
    %c0_1 = arith.constant 0 : index
    %c0_2 = arith.constant 0 : index
    %1 = vector.load %arg2[%c0_1, %c0_2] : memref<2048x128xf32, #tpu.memory_space<vmem>>, vector<2048x128xf32>
    %cst = arith.constant dense<0.000000e+00> : vector<196x128xf32>
    %2 = tpu.matmul %0, %1, %cst {dimension_numbers = #tpu.dot_dimension_numbers<[1], [0], [0], [1], [0, 0, 1, 1], [], []>} : vector<196x2048xf32>, vector<2048x128xf32>, vector<196x128xf32> -> vector<196x128xf32>
    %c0_3 = arith.constant 0 : index
    %c0_4 = arith.constant 0 : index
    %3 = vector.load %arg3[%c0_3, %c0_4] : memref<1x128xf32, #tpu.memory_space<vmem>>, vector<1x128xf32>
    %4 = vector.broadcast %3 : vector<1x128xf32> to vector<196x128xf32>
    %5 = arith.addf %2, %4 : vector<196x128xf32>
    %c0_5 = arith.constant 0 : index
    %c0_6 = arith.constant 0 : index
    %6 = vector.load %arg4[%c0_5, %c0_6] : memref<196x128xf32, #tpu.memory_space<vmem>>, vector<196x128xf32>
    tpu.vector_store %arg4[%c0_5, %c0_6], %5 {strides = array<i32>} : memref<196x128xf32, #tpu.memory_space<vmem>>, vector<196x128xf32>,
    return
  }
  func.func @transform_0(%arg0: i32) -> (i32, i32) {
    %c0_i32 = arith.constant 0 : i32
    %c0_i32_0 = arith.constant 0 : i32
    %c0_i32_1 = arith.constant 0 : i32
    return %c0_i32, %c0_i32_0 : i32, i32
  }
  func.func @transform_1(%arg0: i32) -> (i32, i32) {
    %c0_i32 = arith.constant 0 : i32
    %c0_i32_0 = arith.constant 0 : i32
    return %c0_i32, %arg0 : i32, i32
  }
  func.func @transform_2(%arg0: i32) -> (i32, i32) {
    %c0_i32 = arith.constant 0 : i32
    %c0_i32_0 = arith.constant 0 : i32
    return %c0_i32, %arg0 : i32, i32
  }
  func.func @transform_3(%arg0: i32) -> (i32, i32) {
    %c0_i32 = arith.constant 0 : i32
    %c0_i32_0 = arith.constant 0 : i32
    return %c0_i32, %arg0 : i32, i32
  }
}

</mosaic_0001>

<llo_original>
// kernel: tpu_custom_call.1
$region0: #{tpu_custom_call.1}
  #allocation0 [shape = 'u32[]', space=smem, size = 0x4, offset = 0x4, fixed_abs, tag = 'smem constant byte address 0x4 - core index']
  #allocation1 [shape = 'u32[144,128]{1,0:T(1,128)}', space=vmem, size = 0x12000, scoped, tag = 'internal scratch']
  %s0 = inlined_call_operand.hbm [shape: f32[196,2048], index: 0, kind: input, shape index: {}]
  %s1 = inlined_call_operand.hbm [shape: f32[2048,512], index: 1, kind: input, shape index: {}]
  %s2 = inlined_call_operand.hbm [shape: f32[1,512], index: 2, kind: input, shape index: {}]
  %s3 = inlined_call_operand.hbm [shape: f32[196,512], index: 3, kind: output, shape index: {}]
  %s4 = sld [smem:[#allocation0]]
  $region57: #{tpu_custom_call.1} parent=0
    _
  %s6 = ssub.s32 1, %s4
  %s7 = scalar_select 0, %s6, %s4
  $region1: #{tpu_custom_call.1} parent=0
    #allocation2 [shape = 'u8[1638400]{0}', space=vmem, size = 0x190000, scoped, tag = 'input window, operand 0, single buffered']
    #allocation3 [shape = 's32[2]{0}', space=sflag, size = 0x8, scoped, tag = 'scoped memory for tpu_custom_call.1']
    #allocation4 [shape = 's32[2]{0}', space=sflag, size = 0x8, scoped, tag = 'scoped memory for tpu_custom_call.1']
    #allocation5 [shape = 'u8[2097152]{0}', space=vmem, size = 0x200000, scoped, tag = 'input window, operand 1']
    #allocation6 [shape = 's32[2]{0}', space=sflag, size = 0x8, scoped, tag = 'scoped memory for tpu_custom_call.1']
    #allocation7 [shape = 'u8[1024]{0}', space=vmem, size = 0x400, scoped, tag = 'input window, operand 2']
    #allocation8 [shape = 'u8[204800]{0}', space=vmem, size = 0x32000, scoped, tag = 'output window, operand 0']
    %8 = vsyncpa [#allocation3], 0
    %9 = vsyncpa [#allocation6], 0
    %s10 = scalar_lea.sflag [#allocation6], 1
    %11 = vsyncpa %s10, 0
    %12 = vsyncpa [#allocation4], 0
    %s13 = scalar_lea.sflag [#allocation4], 1
    %14 = vsyncpa %s13, 0
    loop: start=0, step=1, limit=6
    $region2: #{tpu_custom_call.1} parent=1 // loop_pre_header
      _
    $region3: #{tpu_custom_call.1} parent=1 // loop_header
      %s16 = sphi 0, %s20
      %p17 = scmp.ge.s32.totalorder %s16, 6
      %s24 = sphi 0, %s24
      %s26 = sphi 0, %s24
      %s27 = sphi 0, %s26
      %s41 = sphi 0, %s27
      %s47 = sphi 0, %s49
      %s50 = sphi 0, %s47
      %s51 = sphi 0, %s50
      %s67 = sphi 0, %s51
      %s73 = sphi 0, %s75
      %s76 = sphi 0, %s73
      %s77 = sphi 0, %s76
      %s93 = sphi 0, %s77
      %s99 = sphi 0, %s101
      %s102 = sphi 0, %s99
      %s103 = sphi 0, %s102
      %s119 = sphi 0, %s103
    $region4: #{tpu_custom_call.1} parent=1 // loop_header_branch
      %19 = sbr.rel (%p17) target = $region8
    $region5: #{tpu_custom_call.1} parent=1 // loop_body
      %s21 = ssub.s32 %s16, 1
      %s22 = ssub.s32 %s16, 2
      %s23 = sadd.s32 %s16, 1
      %s25 = sadd.s32 %s24, 1
      %p28 = scmp.eq.s32.totalorder %s16, 3
      %p29 = scmp.ne.s32.totalorder %s24, %s26
      %p30 = scmp.eq.s32.totalorder %s16, 0
      %p31 = por %p29, %p30
      %p32 = scmp.ne.s32.totalorder %s24, %s26
      %p33 = scmp.eq.s32.totalorder %s21, 3
      %p34 = por %p32, %p33
      %p35 = scmp.ne.s32.totalorder %s26, %s27
      %p36 = scmp.eq.s32.totalorder %s21, 0
      %p37 = por %p35, %p36
      %p38 = scmp.ne.s32.totalorder %s26, %s27
      %p39 = scmp.eq.s32.totalorder %s22, 3
      %p40 = por %p38, %p39
      %p42 = scmp.ne.s32.totalorder %s27, %s41
      %p43 = scmp.eq.s32.totalorder %s22, 0
      %p44 = por %p42, %p43
      %s45 = ssub.s32 %s16, %s23
      %p46 = scmp.eq.s32.totalorder %s45, 0
      %s48 = sadd.s32 %s47, 1
      %s49 = scalar_select %p46, %s47, %s48
      %p52 = pneg %p46
      %p53 = scmp.eq.s32.totalorder %s16, 3
      %p54 = por %p52, %p53
      %p55 = scmp.ne.s32.totalorder %s47, %s50
      %p56 = scmp.eq.s32.totalorder %s16, 0
      %p57 = por %p55, %p56
      %p58 = scmp.ne.s32.totalorder %s47, %s50
      %p59 = scmp.eq.s32.totalorder %s21, 3
      %p60 = por %p58, %p59
      %p61 = scmp.ne.s32.totalorder %s50, %s51
      %p62 = scmp.eq.s32.totalorder %s21, 0
      %p63 = por %p61, %p62
      %p64 = scmp.ne.s32.totalorder %s50, %s51
      %p65 = scmp.eq.s32.totalorder %s22, 3
      %p66 = por %p64, %p65
      %p68 = scmp.ne.s32.totalorder %s51, %s67
      %p69 = scmp.eq.s32.totalorder %s22, 0
      %p70 = por %p68, %p69
      %s71 = ssub.s32 %s16, %s23
      %p72 = scmp.eq.s32.totalorder %s71, 0
      %s74 = sadd.s32 %s73, 1
      %s75 = scalar_select %p72, %s73, %s74
      %p78 = pneg %p72
      %p79 = scmp.eq.s32.totalorder %s16, 3
      %p80 = por %p78, %p79
      %p81 = scmp.ne.s32.totalorder %s73, %s76
      %p82 = scmp.eq.s32.totalorder %s16, 0
      %p83 = por %p81, %p82
      %p84 = scmp.ne.s32.totalorder %s73, %s76
      %p85 = scmp.eq.s32.totalorder %s21, 3
      %p86 = por %p84, %p85
      %p87 = scmp.ne.s32.totalorder %s76, %s77
      %p88 = scmp.eq.s32.totalorder %s21, 0
      %p89 = por %p87, %p88
      %p90 = scmp.ne.s32.totalorder %s76, %s77
      %p91 = scmp.eq.s32.totalorder %s22, 3
      %p92 = por %p90, %p91
      %p94 = scmp.ne.s32.totalorder %s77, %s93
      %p95 = scmp.eq.s32.totalorder %s22, 0
      %p96 = por %p94, %p95
      %s97 = ssub.s32 %s16, %s23
      %p98 = scmp.eq.s32.totalorder %s97, 0
      %s100 = sadd.s32 %s99, 1
      %s101 = scalar_select %p98, %s99, %s100
      %p104 = pneg %p98
      %p105 = scmp.eq.s32.totalorder %s16, 3
      %p106 = por %p104, %p105
      %p107 = scmp.ne.s32.totalorder %s99, %s102
      %p108 = scmp.eq.s32.totalorder %s16, 0
      %p109 = por %p107, %p108
      %p110 = scmp.ne.s32.totalorder %s99, %s102
      %p111 = scmp.eq.s32.totalorder %s21, 3
      %p112 = por %p110, %p111
      %p113 = scmp.ne.s32.totalorder %s102, %s103
      %p114 = scmp.eq.s32.totalorder %s21, 0
      %p115 = por %p113, %p114
      %p116 = scmp.ne.s32.totalorder %s102, %s103
      %p117 = scmp.eq.s32.totalorder %s22, 3
      %p118 = por %p116, %p117
      %p120 = scmp.ne.s32.totalorder %s103, %s119
      %p121 = scmp.eq.s32.totalorder %s22, 0
      %p122 = por %p120, %p121
      %p123 = scmp.le.s32.totalorder 1, %s16
      %p124 = scmp.lt.s32.totalorder %s16, 5
      %p125 = pnand %p123, %p124
      %p126 = pneg %p125
      // Predicated region
      $region9: #{tpu_custom_call.1} parent=5 // pred_check
        _
      $region10: #{tpu_custom_call.1} parent=5 // pred_check_branch
        %128 = sbr.rel (%p125) target = $region12
      $region11: #{tpu_custom_call.1} parent=5 // pred_region
        %s129 = ssub.s32 %s16, 1
        // Predicated region
        $region13: #{tpu_custom_call.1} parent=11 // pred_check
          %p130 = pneg %p37
        $region14: #{tpu_custom_call.1} parent=11 // pred_check_branch
          %132 = sbr.rel (%p130) target = $region16
        $region15: #{tpu_custom_call.1} parent=11 // pred_region
          %s134 = ssub.s32 51200, 51200
          %135 = vsyncadd [#allocation3], %s134
          %s136 = sshll.u32 [#allocation2], 4
          %s137 = int_to_ptr.vmem [resolvable:$true] %s136
          %142 = dma.hbm_to_vmem [thread:$0]  %s0, 51200, %s137, [#allocation3], 2048, 2048, 128
        $region16: #{tpu_custom_call.1} parent=11 // pred_fallthru
          _
      $region12: #{tpu_custom_call.1} parent=5 // pred_fallthru
        _
      %p143 = scmp.lt.s32.totalorder %s16, 4
      // Predicated region
      $region17: #{tpu_custom_call.1} parent=5 // pred_check
        %p144 = pneg %p143
      $region18: #{tpu_custom_call.1} parent=5 // pred_check_branch
        %146 = sbr.rel (%p144) target = $region20
      $region19: #{tpu_custom_call.1} parent=5 // pred_region
        // Predicated region
        $region21: #{tpu_custom_call.1} parent=19 // pred_check
          %p147 = pneg %p57
        $region22: #{tpu_custom_call.1} parent=19 // pred_check_branch
          %149 = sbr.rel (%p147) target = $region24
        $region23: #{tpu_custom_call.1} parent=19 // pred_region
          %s150 = sand.u32 %s16, 1
          %s151 = scalar_lea.sflag [#allocation6], %s150
          %s152 = sand.u32 %s47, 1
          %s153 = smul.addr %s152, 2048
          %s154 = scalar_lea.vmem [#allocation5], %s153
          %s156 = ssub.s32 32768, 32768
          %157 = vsyncadd %s151, %s156
          %s158 = smul.addr %s16, 128
          %s159 = scalar_lea.hbm %s1, %s158
          %s160 = sshll.u32 %s154, 4
          %s161 = int_to_ptr.vmem [resolvable:$true] %s160
          %166 = dma.hbm_to_vmem [thread:$0]  %s159, 32768, %s161, %s151, 512, 128, 8
        $region24: #{tpu_custom_call.1} parent=19 // pred_fallthru
          _
        // Predicated region
        $region25: #{tpu_custom_call.1} parent=19 // pred_check
          %p167 = pneg %p83
        $region26: #{tpu_custom_call.1} parent=19 // pred_check_branch
          %169 = sbr.rel (%p167) target = $region28
        $region27: #{tpu_custom_call.1} parent=19 // pred_region
          %s170 = sand.u32 %s16, 1
          %s171 = scalar_lea.sflag [#allocation6], %s170
          %s172 = sand.u32 %s73, 1
          %s173 = scalar_lea.vmem [#allocation7], %s172
          %s175 = ssub.s32 16, 16
          %176 = vsyncadd %s171, %s175
          %s177 = smul.addr %s16, 16
          %s178 = scalar_lea.hbm %s2, %s177
          %s180 = sshll.u32 %s173, 4
          %s181 = int_to_ptr.vmem [resolvable:$true] %s180
          %183 = dma.hbm_to_vmem [thread:$0]  %s178, 16, %s181, %s171
        $region28: #{tpu_custom_call.1} parent=19 // pred_fallthru
          _
      $region20: #{tpu_custom_call.1} parent=5 // pred_fallthru
        _
      %p184 = scmp.le.s32.totalorder 1, %s16
      %p185 = scmp.lt.s32.totalorder %s16, 5
      %p186 = pnand %p184, %p185
      %p187 = pneg %p186
      // Predicated region
      $region29: #{tpu_custom_call.1} parent=5 // pred_check
        _
      $region30: #{tpu_custom_call.1} parent=5 // pred_check_branch
        %189 = sbr.rel (%p186) target = $region32
      $region31: #{tpu_custom_call.1} parent=5 // pred_region
        %s190 = ssub.s32 %s16, 1
        // Predicated region
        $region33: #{tpu_custom_call.1} parent=31 // pred_check
          %p191 = pneg %p37
        $region34: #{tpu_custom_call.1} parent=31 // pred_check_branch
          %193 = sbr.rel (%p191) target = $region36
        $region35: #{tpu_custom_call.1} parent=31 // pred_region
          %194 = dma.done [#allocation3], 51200
        $region36: #{tpu_custom_call.1} parent=31 // pred_fallthru
          _
        %s195 = sand.u32 %s21, 1
        %s196 = scalar_lea.sflag [#allocation6], %s195
        %s197 = sand.u32 %s50, 1
        %s198 = smul.addr %s197, 2048
        %s199 = scalar_lea.vmem [#allocation5], %s198
        // Predicated region
        $region37: #{tpu_custom_call.1} parent=31 // pred_check
          %p200 = pneg %p63
        $region38: #{tpu_custom_call.1} parent=31 // pred_check_branch
          %202 = sbr.rel (%p200) target = $region40
        $region39: #{tpu_custom_call.1} parent=31 // pred_region
          %203 = dma.done %s196, 32768
        $region40: #{tpu_custom_call.1} parent=31 // pred_fallthru
          _
        %s204 = sand.u32 %s21, 1
        %s205 = scalar_lea.sflag [#allocation6], %s204
        %s206 = sand.u32 %s76, 1
        %s207 = scalar_lea.vmem [#allocation7], %s206
        // Predicated region
        $region41: #{tpu_custom_call.1} parent=31 // pred_check
          %p208 = pneg %p89
        $region42: #{tpu_custom_call.1} parent=31 // pred_check_branch
          %210 = sbr.rel (%p208) target = $region44
        $region43: #{tpu_custom_call.1} parent=31 // pred_region
          %211 = dma.done %s205, 16
        $region44: #{tpu_custom_call.1} parent=31 // pred_fallthru
          _
        %p212 = pneg %p37
        %p213 = pneg %p34
        %s214 = sand.u32 %s21, 1
        %s215 = scalar_lea.sflag [#allocation6], %s214
        %s216 = sand.u32 %s50, 1
        %s217 = smul.addr %s216, 2048
        %s218 = scalar_lea.vmem [#allocation5], %s217
        %p219 = pneg %p63
        %p220 = pneg %p60
        %s221 = sand.u32 %s21, 1
        %s222 = scalar_lea.sflag [#allocation6], %s221
        %s223 = sand.u32 %s76, 1
        %s224 = scalar_lea.vmem [#allocation7], %s223
        %p225 = pneg %p89
        %p226 = pneg %p86
        %p227 = pneg %p115
        %p228 = pneg %p112
        %s229 = sand.u32 %s102, 1
        %s230 = scalar_lea.sflag [#allocation4], %s229
        %s231 = sand.u32 %s102, 1
        %s232 = smul.addr %s231, 200
        %s233 = scalar_lea.vmem [#allocation8], %s232
        %v234 = vld [vmem:[#allocation2] sm:$0xff]
        %v235 = vld [vmem:[#allocation2 + $0x8] sm:$0xff]
        %v236 = vld [vmem:[#allocation2 + $0x10] sm:$0xff]
        %v237 = vld [vmem:[#allocation2 + $0x18] sm:$0xff]
        %v238 = vld [vmem:[#allocation2 + $0x20] sm:$0xff]
        %v239 = vld [vmem:[#allocation2 + $0x28] sm:$0xff]
        %v240 = vld [vmem:[#allocation2 + $0x30] sm:$0xff]
        %v241 = vld [vmem:[#allocation2 + $0x38] sm:$0xff]
        %v242 = vld [vmem:[#allocation2 + $0x40] sm:$0xff]
        %v243 = vld [vmem:[#allocation2 + $0x48] sm:$0xff]
        %v244 = vld [vmem:[#allocation2 + $0x50] sm:$0xff]
        %v245 = vld [vmem:[#allocation2 + $0x58] sm:$0xff]
        %v246 = vld [vmem:[#allocation2 + $0x60] sm:$0xff]
        %v247 = vld [vmem:[#allocation2 + $0x68] sm:$0xff]
        %v248 = vld [vmem:[#allocation2 + $0x70] sm:$0xff]
        %v249 = vld [vmem:[#allocation2 + $0x78] sm:$0xff]
        %v250 = vld [vmem:[#allocation2 + $0x80] sm:$0xff]
        %v251 = vld [vmem:[#allocation2 + $0x88] sm:$0xff]
        %v252 = vld [vmem:[#allocation2 + $0x90] sm:$0xff]
        %v253 = vld [vmem:[#allocation2 + $0x98] sm:$0xff]
        %v254 = vld [vmem:[#allocation2 + $0xa0] sm:$0xff]
        %v255 = vld [vmem:[#allocation2 + $0xa8] sm:$0xff]
        %v256 = vld [vmem:[#allocation2 + $0xb0] sm:$0xff]
        %v257 = vld [vmem:[#allocation2 + $0xb8] sm:$0xff]
        %v258 = vld [vmem:[#allocation2 + $0xc0] sm:$0xff]
        %v259 = vld [vmem:[#allocation2 + $0xc8] sm:$0xff]
        %v260 = vld [vmem:[#allocation2 + $0xd0] sm:$0xff]
        %v261 = vld [vmem:[#allocation2 + $0xd8] sm:$0xff]
        %v262 = vld [vmem:[#allocation2 + $0xe0] sm:$0xff]
        %v263 = vld [vmem:[#allocation2 + $0xe8] sm:$0xff]
        %v264 = vld [vmem:[#allocation2 + $0xf0] sm:$0xff]
        %v265 = vld [vmem:[#allocation2 + $0xf8] sm:$0xff]
        %v266 = vld [vmem:[#allocation2 + $0x100] sm:$0xff]
        %v267 = vld [vmem:[#allocation2 + $0x108] sm:$0xff]
        %v268 = vld [vmem:[#allocation2 + $0x110] sm:$0xff]
        %v269 = vld [vmem:[#allocation2 + $0x118] sm:$0xff]
        %v270 = vld [vmem:[#allocation2 + $0x120] sm:$0xff]
        %v271 = vld [vmem:[#allocation2 + $0x128] sm:$0xff]
        %v272 = vld [vmem:[#allocation2 + $0x130] sm:$0xff]
        %v273 = vld [vmem:[#allocation2 + $0x138] sm:$0xff]
        %v274 = vld [vmem:[#allocation2 + $0x140] sm:$0xff]
        %v275 = vld [vmem:[#allocation2 + $0x148] sm:$0xff]
        %v276 = vld [vmem:[#allocation2 + $0x150] sm:$0xff]
        %v277 = vld [vmem:[#allocation2 + $0x158] sm:$0xff]
        %v278 = vld [vmem:[#allocation2 + $0x160] sm:$0xff]
        %v279 = vld [vmem:[#allocation2 + $0x168] sm:$0xff]
        %v280 = vld [vmem:[#allocation2 + $0x170] sm:$0xff]
        %v281 = vld [vmem:[#allocation2 + $0x178] sm:$0xff]
        %v282 = vld [vmem:[#allocation2 + $0x180] sm:$0xff]
        %v283 = vld [vmem:[#allocation2 + $0x188] sm:$0xff]
        %v284 = vld [vmem:[#allocation2 + $0x190] sm:$0xff]
        %v285 = vld [vmem:[#allocation2 + $0x198] sm:$0xff]
        %v286 = vld [vmem:[#allocation2 + $0x1a0] sm:$0xff]
        %v287 = vld [vmem:[#allocation2 + $0x1a8] sm:$0xff]
        %v288 = vld [vmem:[#allocation2 + $0x1b0] sm:$0xff]
        %v289 = vld [vmem:[#allocation2 + $0x1b8] sm:$0xff]
        %v290 = vld [vmem:[#allocation2 + $0x1c0] sm:$0xff]
        %v291 = vld [vmem:[#allocation2 + $0x1c8] sm:$0xff]
        %v292 = vld [vmem:[#allocation2 + $0x1d0] sm:$0xff]
        %v293 = vld [vmem:[#allocation2 + $0x1d8] sm:$0xff]
        %v294 = vld [vmem:[#allocation2 + $0x1e0] sm:$0xff]
        %v295 = vld [vmem:[#allocation2 + $0x1e8] sm:$0xff]
        %v296 = vld [vmem:[#allocation2 + $0x1f0] sm:$0xff]
        %v297 = vld [vmem:[#allocation2 + $0x1f8] sm:$0xff]
        %v298 = vld [vmem:[#allocation2 + $0x200] sm:$0xff]
        %v299 = vld [vmem:[#allocation2 + $0x208] sm:$0xff]
        %v300 = vld [vmem:[#allocation2 + $0x210] sm:$0xff]
        %v301 = vld [vmem:[#allocation2 + $0x218] sm:$0xff]
        %v302 = vld [vmem:[#allocation2 + $0x220] sm:$0xff]
        %v303 = vld [vmem:[#allocation2 + $0x228] sm:$0xff]
        %v304 = vld [vmem:[#allocation2 + $0x230] sm:$0xff]
        %v305 = vld [vmem:[#allocation2 + $0x238] sm:$0xff]
        %v306 = vld [vmem:[#allocation2 + $0x240] sm:$0xff]
        %v307 = vld [vmem:[#allocation2 + $0x248] sm:$0xff]
        %v308 = vld [vmem:[#allocation2 + $0x250] sm:$0xff]
        %v309 = vld [vmem:[#allocation2 + $0x258] sm:$0xff]
        %v310 = vld [vmem:[#allocation2 + $0x260] sm:$0xff]
        %v311 = vld [vmem:[#allocation2 + $0x268] sm:$0xff]
        %v312 = vld [vmem:[#allocation2 + $0x270] sm:$0xff]
        %v313 = vld [vmem:[#allocation2 + $0x278] sm:$0xff]
        %v314 = vld [vmem:[#allocation2 + $0x280] sm:$0xff]
        %v315 = vld [vmem:[#allocation2 + $0x288] sm:$0xff]
        %v316 = vld [vmem:[#allocation2 + $0x290] sm:$0xff]
        %v317 = vld [vmem:[#allocation2 + $0x298] sm:$0xff]
        %v318 = vld [vmem:[#allocation2 + $0x2a0] sm:$0xff]
        %v319 = vld [vmem:[#allocation2 + $0x2a8] sm:$0xff]
        %v320 = vld [vmem:[#allocation2 + $0x2b0] sm:$0xff]
        %v321 = vld [vmem:[#allocation2 + $0x2b8] sm:$0xff]
        %v322 = vld [vmem:[#allocation2 + $0x2c0] sm:$0xff]
        %v323 = vld [vmem:[#allocation2 + $0x2c8] sm:$0xff]
        %v324 = vld [vmem:[#allocation2 + $0x2d0] sm:$0xff]
        %v325 = vld [vmem:[#allocation2 + $0x2d8] sm:$0xff]
        %v326 = vld [vmem:[#allocation2 + $0x2e0] sm:$0xff]
        %v327 = vld [vmem:[#allocation2 + $0x2e8] sm:$0xff]
        %v328 = vld [vmem:[#allocation2 + $0x2f0] sm:$0xff]
        %v329 = vld [vmem:[#allocation2 + $0x2f8] sm:$0xff]
        %v330 = vld [vmem:[#allocation2 + $0x300] sm:$0xff]
        %v331 = vld [vmem:[#allocation2 + $0x308] sm:$0xff]
        %v332 = vld [vmem:[#allocation2 + $0x310] sm:$0xff]
        %v333 = vld [vmem:[#allocation2 + $0x318] sm:$0xff]
        %v334 = vld [vmem:[#allocation2 + $0x320] sm:$0xff]
        %v335 = vld [vmem:[#allocation2 + $0x328] sm:$0xff]
        %v336 = vld [vmem:[#allocation2 + $0x330] sm:$0xff]
        %v337 = vld [vmem:[#allocation2 + $0x338] sm:$0xff]
        %v338 = vld [vmem:[#allocation2 + $0x340] sm:$0xff]
        %v339 = vld [vmem:[#allocation2 + $0x348] sm:$0xff]
        %v340 = vld [vmem:[#allocation2 + $0x350] sm:$0xff]
        %v341 = vld [vmem:[#allocation2 + $0x358] sm:$0xff]
        %v342 = vld [vmem:[#allocation2 + $0x360] sm:$0xff]
        %v343 = vld [vmem:[#allocation2 + $0x368] sm:$0xff]
        %v344 = vld [vmem:[#allocation2 + $0x370] sm:$0xff]
        %v345 = vld [vmem:[#allocation2 + $0x378] sm:$0xff]
        %v346 = vld [vmem:[#allocation2 + $0x380] sm:$0xff]
        %v347 = vld [vmem:[#allocation2 + $0x388] sm:$0xff]
        %v348 = vld [vmem:[#allocation2 + $0x390] sm:$0xff]
        %v349 = vld [vmem:[#allocation2 + $0x398] sm:$0xff]
        %v350 = vld [vmem:[#allocation2 + $0x3a0] sm:$0xff]
        %v351 = vld [vmem:[#allocation2 + $0x3a8] sm:$0xff]
        %v352 = vld [vmem:[#allocation2 + $0x3b0] sm:$0xff]
        %v353 = vld [vmem:[#allocation2 + $0x3b8] sm:$0xff]
        %v354 = vld [vmem:[#allocation2 + $0x3c0] sm:$0xff]
        %v355 = vld [vmem:[#allocation2 + $0x3c8] sm:$0xff]
        %v356 = vld [vmem:[#allocation2 + $0x3d0] sm:$0xff]
        %v357 = vld [vmem:[#allocation2 + $0x3d8] sm:$0xff]
        %v358 = vld [vmem:[#allocation2 + $0x3e0] sm:$0xff]
        %v359 = vld [vmem:[#allocation2 + $0x3e8] sm:$0xff]
        %v360 = vld [vmem:[#allocation2 + $0x3f0] sm:$0xff]
        %v361 = vld [vmem:[#allocation2 + $0x3f8] sm:$0xff]
        %v362 = vld [vmem:[#allocation2 + $0x400] sm:$0xff]
        %v363 = vld [vmem:[#allocation2 + $0x408] sm:$0xff]
        %v364 = vld [vmem:[#allocation2 + $0x410] sm:$0xff]
        %v365 = vld [vmem:[#allocation2 + $0x418] sm:$0xff]
        %v366 = vld [vmem:[#allocation2 + $0x420] sm:$0xff]
        %v367 = vld [vmem:[#allocation2 + $0x428] sm:$0xff]
        %v368 = vld [vmem:[#allocation2 + $0x430] sm:$0xff]
        %v369 = vld [vmem:[#allocation2 + $0x438] sm:$0xff]
        %v370 = vld [vmem:[#allocation2 + $0x440] sm:$0xff]
        %v371 = vld [vmem:[#allocation2 + $0x448] sm:$0xff]
        %v372 = vld [vmem:[#allocation2 + $0x450] sm:$0xff]
        %v373 = vld [vmem:[#allocation2 + $0x458] sm:$0xff]
        %v374 = vld [vmem:[#allocation2 + $0x460] sm:$0xff]
        %v375 = vld [vmem:[#allocation2 + $0x468] sm:$0xff]
        %v376 = vld [vmem:[#allocation2 + $0x470] sm:$0xff]
        %v377 = vld [vmem:[#allocation2 + $0x478] sm:$0xff]
        %v378 = vld [vmem:[#allocation2 + $0x480] sm:$0xff]
        %v379 = vld [vmem:[#allocation2 + $0x488] sm:$0xff]
        %v380 = vld [vmem:[#allocation2 + $0x490] sm:$0xff]
        %v381 = vld [vmem:[#allocation2 + $0x498] sm:$0xff]
        %v382 = vld [vmem:[#allocation2 + $0x4a0] sm:$0xff]
        %v383 = vld [vmem:[#allocation2 + $0x4a8] sm:$0xff]
        %v384 = vld [vmem:[#allocation2 + $0x4b0] sm:$0xff]
        %v385 = vld [vmem:[#allocation2 + $0x4b8] sm:$0xff]
        %v386 = vld [vmem:[#allocation2 + $0x4c0] sm:$0xff]
        %v387 = vld [vmem:[#allocation2 + $0x4c8] sm:$0xff]
        %v388 = vld [vmem:[#allocation2 + $0x4d0] sm:$0xff]
        %v389 = vld [vmem:[#allocation2 + $0x4d8] sm:$0xff]
        %v390 = vld [vmem:[#allocation2 + $0x4e0] sm:$0xff]
        %v391 = vld [vmem:[#allocation2 + $0x4e8] sm:$0xff]
        %v392 = vld [vmem:[#allocation2 + $0x4f0] sm:$0xff]
        %v393 = vld [vmem:[#allocation2 + $0x4f8] sm:$0xff]
        %v394 = vld [vmem:[#allocation2 + $0x500] sm:$0xff]
        %v395 = vld [vmem:[#allocation2 + $0x508] sm:$0xff]
        %v396 = vld [vmem:[#allocation2 + $0x510] sm:$0xff]
        %v397 = vld [vmem:[#allocation2 + $0x518] sm:$0xff]
        %v398 = vld [vmem:[#allocation2 + $0x520] sm:$0xff]
        %v399 = vld [vmem:[#allocation2 + $0x528] sm:$0xff]
        %v400 = vld [vmem:[#allocation2 + $0x530] sm:$0xff]
        %v401 = vld [vmem:[#allocation2 + $0x538] sm:$0xff]
        %v402 = vld [vmem:[#allocation2 + $0x540] sm:$0xff]
        %v403 = vld [vmem:[#allocation2 + $0x548] sm:$0xff]
        %v404 = vld [vmem:[#allocation2 + $0x550] sm:$0xff]
        %v405 = vld [vmem:[#allocation2 + $0x558] sm:$0xff]
        %v406 = vld [vmem:[#allocation2 + $0x560] sm:$0xff]
        %v407 = vld [vmem:[#allocation2 + $0x568] sm:$0xff]
        %v408 = vld [vmem:[#allocation2 + $0x570] sm:$0xff]
        %v409 = vld [vmem:[#allocation2 + $0x578] sm:$0xff]
        %v410 = vld [vmem:[#allocation2 + $0x580] sm:$0xff]
        %v411 = vld [vmem:[#allocation2 + $0x588] sm:$0xff]
        %v412 = vld [vmem:[#allocation2 + $0x590] sm:$0xff]
        %v413 = vld [vmem:[#allocation2 + $0x598] sm:$0xff]
        %v414 = vld [vmem:[#allocation2 + $0x5a0] sm:$0xff]
        %v415 = vld [vmem:[#allocation2 + $0x5a8] sm:$0xff]
        %v416 = vld [vmem:[#allocation2 + $0x5b0] sm:$0xff]
        %v417 = vld [vmem:[#allocation2 + $0x5b8] sm:$0xff]
        %v418 = vld [vmem:[#allocation2 + $0x5c0] sm:$0xff]
        %v419 = vld [vmem:[#allocation2 + $0x5c8] sm:$0xff]
        %v420 = vld [vmem:[#allocation2 + $0x5d0] sm:$0xff]
        %v421 = vld [vmem:[#allocation2 + $0x5d8] sm:$0xff]
        %v422 = vld [vmem:[#allocation2 + $0x5e0] sm:$0xff]
        %v423 = vld [vmem:[#allocation2 + $0x5e8] sm:$0xff]
        %v424 = vld [vmem:[#allocation2 + $0x5f0] sm:$0xff]
        %v425 = vld [vmem:[#allocation2 + $0x5f8] sm:$0xff]
        %v426 = vld [vmem:[#allocation2 + $0x600] sm:$0xff]
        %v427 = vld [vmem:[#allocation2 + $0x608] sm:$0xff]
        %v428 = vld [vmem:[#allocation2 + $0x610] sm:$0xff]
        %v429 = vld [vmem:[#allocation2 + $0x618] sm:$0xff]
        %v430 = vld [vmem:[#allocation2 + $0x620] sm:$0xff]
        %v431 = vld [vmem:[#allocation2 + $0x628] sm:$0xff]
        %v432 = vld [vmem:[#allocation2 + $0x630] sm:$0xff]
        %v433 = vld [vmem:[#allocation2 + $0x638] sm:$0xff]
        %v434 = vld [vmem:[#allocation2 + $0x640] sm:$0xff]
        %v435 = vld [vmem:[#allocation2 + $0x648] sm:$0xff]
        %v436 = vld [vmem:[#allocation2 + $0x650] sm:$0xff]
        %v437 = vld [vmem:[#allocation2 + $0x658] sm:$0xff]
        %v438 = vld [vmem:[#allocation2 + $0x660] sm:$0xff]
        %v439 = vld [vmem:[#allocation2 + $0x668] sm:$0xff]
        %v440 = vld [vmem:[#allocation2 + $0x670] sm:$0xff]
        %v441 = vld [vmem:[#allocation2 + $0x678] sm:$0xff]
        %v442 = vld [vmem:[#allocation2 + $0x680] sm:$0xff]
        %v443 = vld [vmem:[#allocation2 + $0x688] sm:$0xff]
        %v444 = vld [vmem:[#allocation2 + $0x690] sm:$0xff]
        %v445 = vld [vmem:[#allocation2 + $0x698] sm:$0xff]
        %v446 = vld [vmem:[#allocation2 + $0x6a0] sm:$0xff]
        %v447 = vld [vmem:[#allocation2 + $0x6a8] sm:$0xff]
        %v448 = vld [vmem:[#allocation2 + $0x6b0] sm:$0xff]
        %v449 = vld [vmem:[#allocation2 + $0x6b8] sm:$0xff]
        %v450 = vld [vmem:[#allocation2 + $0x6c0] sm:$0xff]
        %v451 = vld [vmem:[#allocation2 + $0x6c8] sm:$0xff]
        %v452 = vld [vmem:[#allocation2 + $0x6d0] sm:$0xff]
        %v453 = vld [vmem:[#allocation2 + $0x6d8] sm:$0xff]
        %v454 = vld [vmem:[#allocation2 + $0x6e0] sm:$0xff]
        %v455 = vld [vmem:[#allocation2 + $0x6e8] sm:$0xff]
        %v456 = vld [vmem:[#allocation2 + $0x6f0] sm:$0xff]
        %v457 = vld [vmem:[#allocation2 + $0x6f8] sm:$0xff]
        %v458 = vld [vmem:[#allocation2 + $0x700] sm:$0xff]
        %v459 = vld [vmem:[#allocation2 + $0x708] sm:$0xff]
        %v460 = vld [vmem:[#allocation2 + $0x710] sm:$0xff]
        %v461 = vld [vmem:[#allocation2 + $0x718] sm:$0xff]
        %v462 = vld [vmem:[#allocation2 + $0x720] sm:$0xff]
        %v463 = vld [vmem:[#allocation2 + $0x728] sm:$0xff]
        %v464 = vld [vmem:[#allocation2 + $0x730] sm:$0xff]
        %v465 = vld [vmem:[#allocation2 + $0x738] sm:$0xff]
        %v466 = vld [vmem:[#allocation2 + $0x740] sm:$0xff]
        %v467 = vld [vmem:[#allocation2 + $0x748] sm:$0xff]
        %v468 = vld [vmem:[#allocation2 + $0x750] sm:$0xff]
        %v469 = vld [vmem:[#allocation2 + $0x758] sm:$0xff]
        %v470 = vld [vmem:[#allocation2 + $0x760] sm:$0xff]
        %v471 = vld [vmem:[#allocation2 + $0x768] sm:$0xff]
        %v472 = vld [vmem:[#allocation2 + $0x770] sm:$0xff]
        %v473 = vld [vmem:[#allocation2 + $0x778] sm:$0xff]
        %v474 = vld [vmem:[#allocation2 + $0x780] sm:$0xff]
        %v475 = vld [vmem:[#allocation2 + $0x788] sm:$0xff]
        %v476 = vld [vmem:[#allocation2 + $0x790] sm:$0xff]
        %v477 = vld [vmem:[#allocation2 + $0x798] sm:$0xff]
        %v478 = vld [vmem:[#allocation2 + $0x7a0] sm:$0xff]
        %v479 = vld [vmem:[#allocation2 + $0x7a8] sm:$0xff]
        %v480 = vld [vmem:[#allocation2 + $0x7b0] sm:$0xff]
        %v481 = vld [vmem:[#allocation2 + $0x7b8] sm:$0xff]
        %v482 = vld [vmem:[#allocation2 + $0x7c0] sm:$0xff]
        %v483 = vld [vmem:[#allocation2 + $0x7c8] sm:$0xff]
        %v484 = vld [vmem:[#allocation2 + $0x7d0] sm:$0xff]
        %v485 = vld [vmem:[#allocation2 + $0x7d8] sm:$0xff]
        %v486 = vld [vmem:[#allocation2 + $0x7e0] sm:$0xff]
        %v487 = vld [vmem:[#allocation2 + $0x7e8] sm:$0xff]
        %v488 = vld [vmem:[#allocation2 + $0x7f0] sm:$0xff]
        %v489 = vld [vmem:[#allocation2 + $0x7f8] sm:$0xff]
        %v490 = vld [vmem:[#allocation2 + $0x800] sm:$0xff]
        %v491 = vld [vmem:[#allocation2 + $0x808] sm:$0xff]
        %v492 = vld [vmem:[#allocation2 + $0x810] sm:$0xff]
        %v493 = vld [vmem:[#allocation2 + $0x818] sm:$0xff]
        %v494 = vld [vmem:[#allocation2 + $0x820] sm:$0xff]
        %v495 = vld [vmem:[#allocation2 + $0x828] sm:$0xff]
        %v496 = vld [vmem:[#allocation2 + $0x830] sm:$0xff]
        %v497 = vld [vmem:[#allocation2 + $0x838] sm:$0xff]
        %v498 = vld [vmem:[#allocation2 + $0x840] sm:$0xff]
        %v499 = vld [vmem:[#allocation2 + $0x848] sm:$0xff]
        %v500 = vld [vmem:[#allocation2 + $0x850] sm:$0xff]
        %v501 = vld [vmem:[#allocation2 + $0x858] sm:$0xff]
        %v502 = vld [vmem:[#allocation2 + $0x860] sm:$0xff]
        %v503 = vld [vmem:[#allocation2 + $0x868] sm:$0xff]
        %v504 = vld [vmem:[#allocation2 + $0x870] sm:$0xff]
        %v505 = vld [vmem:[#allocation2 + $0x878] sm:$0xff]
        %v506 = vld [vmem:[#allocation2 + $0x880] sm:$0xff]
        %v507 = vld [vmem:[#allocation2 + $0x888] sm:$0xff]
        %v508 = vld [vmem:[#allocation2 + $0x890] sm:$0xff]
        %v509 = vld [vmem:[#allocation2 + $0x898] sm:$0xff]
        %v510 = vld [vmem:[#allocation2 + $0x8a0] sm:$0xff]
        %v511 = vld [vmem:[#allocation2 + $0x8a8] sm:$0xff]
        %v512 = vld [vmem:[#allocation2 + $0x8b0] sm:$0xff]
        %v513 = vld [vmem:[#allocation2 + $0x8b8] sm:$0xff]
        %v514 = vld [vmem:[#allocation2 + $0x8c0] sm:$0xff]
        %v515 = vld [vmem:[#allocation2 + $0x8c8] sm:$0xff]
        %v516 = vld [vmem:[#allocation2 + $0x8d0] sm:$0xff]
        %v517 = vld [vmem:[#allocation2 + $0x8d8] sm:$0xff]
        %v518 = vld [vmem:[#allocation2 + $0x8e0] sm:$0xff]
        %v519 = vld [vmem:[#allocation2 + $0x8e8] sm:$0xff]
        %v520 = vld [vmem:[#allocation2 + $0x8f0] sm:$0xff]
        %v521 = vld [vmem:[#allocation2 + $0x8f8] sm:$0xff]
        %v522 = vld [vmem:[#allocation2 + $0x900] sm:$0xff]
        %v523 = vld [vmem:[#allocation2 + $0x908] sm:$0xff]
        %v524 = vld [vmem:[#allocation2 + $0x910] sm:$0xff]
        %v525 = vld [vmem:[#allocation2 + $0x918] sm:$0xff]
        %v526 = vld [vmem:[#allocation2 + $0x920] sm:$0xff]
        %v527 = vld [vmem:[#allocation2 + $0x928] sm:$0xff]
        %v528 = vld [vmem:[#allocation2 + $0x930] sm:$0xff]
        %v529 = vld [vmem:[#allocation2 + $0x938] sm:$0xff]
        %v530 = vld [vmem:[#allocation2 + $0x940] sm:$0xff]
        %v531 = vld [vmem:[#allocation2 + $0x948] sm:$0xff]
        %v532 = vld [vmem:[#allocation2 + $0x950] sm:$0xff]
        %v533 = vld [vmem:[#allocation2 + $0x958] sm:$0xff]
        %v534 = vld [vmem:[#allocation2 + $0x960] sm:$0xff]
        %v535 = vld [vmem:[#allocation2 + $0x968] sm:$0xff]
        %v536 = vld [vmem:[#allocation2 + $0x970] sm:$0xff]
        %v537 = vld [vmem:[#allocation2 + $0x978] sm:$0xff]
        %v538 = vld [vmem:[#allocation2 + $0x980] sm:$0xff]
        %v539 = vld [vmem:[#allocation2 + $0x988] sm:$0xff]
        %v540 = vld [vmem:[#allocation2 + $0x990] sm:$0xff]
        %v541 = vld [vmem:[#allocation2 + $0x998] sm:$0xff]
        %v542 = vld [vmem:[#allocation2 + $0x9a0] sm:$0xff]
        %v543 = vld [vmem:[#allocation2 + $0x9a8] sm:$0xff]
        %v544 = vld [vmem:[#allocation2 + $0x9b0] sm:$0xff]
        %v545 = vld [vmem:[#allocation2 + $0x9b8] sm:$0xff]
        %v546 = vld [vmem:[#allocation2 + $0x9c0] sm:$0xff]
        %v547 = vld [vmem:[#allocation2 + $0x9c8] sm:$0xff]
        %v548 = vld [vmem:[#allocation2 + $0x9d0] sm:$0xff]
        %v549 = vld [vmem:[#allocation2 + $0x9d8] sm:$0xff]
        %v550 = vld [vmem:[#allocation2 + $0x9e0] sm:$0xff]
        %v551 = vld [vmem:[#allocation2 + $0x9e8] sm:$0xff]
        %v552 = vld [vmem:[#allocation2 + $0x9f0] sm:$0xff]
        %v553 = vld [vmem:[#allocation2 + $0x9f8] sm:$0xff]
        %v554 = vld [vmem:[#allocation2 + $0xa00] sm:$0xff]
        %v555 = vld [vmem:[#allocation2 + $0xa08] sm:$0xff]
        %v556 = vld [vmem:[#allocation2 + $0xa10] sm:$0xff]
        %v557 = vld [vmem:[#allocation2 + $0xa18] sm:$0xff]
        %v558 = vld [vmem:[#allocation2 + $0xa20] sm:$0xff]
        %v559 = vld [vmem:[#allocation2 + $0xa28] sm:$0xff]
        %v560 = vld [vmem:[#allocation2 + $0xa30] sm:$0xff]
        %v561 = vld [vmem:[#allocation2 + $0xa38] sm:$0xff]
        %v562 = vld [vmem:[#allocation2 + $0xa40] sm:$0xff]
        %v563 = vld [vmem:[#allocation2 + $0xa48] sm:$0xff]
        %v564 = vld [vmem:[#allocation2 + $0xa50] sm:$0xff]
        %v565 = vld [vmem:[#allocation2 + $0xa58] sm:$0xff]
        %v566 = vld [vmem:[#allocation2 + $0xa60] sm:$0xff]
        %v567 = vld [vmem:[#allocation2 + $0xa68] sm:$0xff]
        %v568 = vld [vmem:[#allocation2 + $0xa70] sm:$0xff]
        %v569 = vld [vmem:[#allocation2 + $0xa78] sm:$0xff]
        %v570 = vld [vmem:[#allocation2 + $0xa80] sm:$0xff]
        %v571 = vld [vmem:[#allocation2 + $0xa88] sm:$0xff]
        %v572 = vld [vmem:[#allocation2 + $0xa90] sm:$0xff]
        %v573 = vld [vmem:[#allocation2 + $0xa98] sm:$0xff]
        %v574 = vld [vmem:[#allocation2 + $0xaa0] sm:$0xff]
        %v575 = vld [vmem:[#allocation2 + $0xaa8] sm:$0xff]
        %v576 = vld [vmem:[#allocation2 + $0xab0] sm:$0xff]
        %v577 = vld [vmem:[#allocation2 + $0xab8] sm:$0xff]
        %v578 = vld [vmem:[#allocation2 + $0xac0] sm:$0xff]
        %v579 = vld [vmem:[#allocation2 + $0xac8] sm:$0xff]
        %v580 = vld [vmem:[#allocation2 + $0xad0] sm:$0xff]
        %v581 = vld [vmem:[#allocation2 + $0xad8] sm:$0xff]
        %v582 = vld [vmem:[#allocation2 + $0xae0] sm:$0xff]
        %v583 = vld [vmem:[#allocation2 + $0xae8] sm:$0xff]
        %v584 = vld [vmem:[#allocation2 + $0xaf0] sm:$0xff]
        %v585 = vld [vmem:[#allocation2 + $0xaf8] sm:$0xff]
        %v586 = vld [vmem:[#allocation2 + $0xb00] sm:$0xff]
        %v587 = vld [vmem:[#allocation2 + $0xb08] sm:$0xff]
        %v588 = vld [vmem:[#allocation2 + $0xb10] sm:$0xff]
        %v589 = vld [vmem:[#allocation2 + $0xb18] sm:$0xff]
        %v590 = vld [vmem:[#allocation2 + $0xb20] sm:$0xff]
        %v591 = vld [vmem:[#allocation2 + $0xb28] sm:$0xff]
        %v592 = vld [vmem:[#allocation2 + $0xb30] sm:$0xff]
        %v593 = vld [vmem:[#allocation2 + $0xb38] sm:$0xff]
        %v594 = vld [vmem:[#allocation2 + $0xb40] sm:$0xff]
        %v595 = vld [vmem:[#allocation2 + $0xb48] sm:$0xff]
        %v596 = vld [vmem:[#allocation2 + $0xb50] sm:$0xff]
        %v597 = vld [vmem:[#allocation2 + $0xb58] sm:$0xff]
        %v598 = vld [vmem:[#allocation2 + $0xb60] sm:$0xff]
        %v599 = vld [vmem:[#allocation2 + $0xb68] sm:$0xff]
        %v600 = vld [vmem:[#allocation2 + $0xb70] sm:$0xff]
        %v601 = vld [vmem:[#allocation2 + $0xb78] sm:$0xff]
        %v602 = vld [vmem:[#allocation2 + $0xb80] sm:$0xff]
        %v603 = vld [vmem:[#allocation2 + $0xb88] sm:$0xff]
        %v604 = vld [vmem:[#allocation2 + $0xb90] sm:$0xff]
        %v605 = vld [vmem:[#allocation2 + $0xb98] sm:$0xff]
        %v606 = vld [vmem:[#allocation2 + $0xba0] sm:$0xff]
        %v607 = vld [vmem:[#allocation2 + $0xba8] sm:$0xff]
        %v608 = vld [vmem:[#allocation2 + $0xbb0] sm:$0xff]
        %v609 = vld [vmem:[#allocation2 + $0xbb8] sm:$0xff]
        %v610 = vld [vmem:[#allocation2 + $0xbc0] sm:$0xff]
        %v611 = vld [vmem:[#allocation2 + $0xbc8] sm:$0xff]
        %v612 = vld [vmem:[#allocation2 + $0xbd0] sm:$0xff]
        %v613 = vld [vmem:[#allocation2 + $0xbd8] sm:$0xff]
        %v614 = vld [vmem:[#allocation2 + $0xbe0] sm:$0xff]
        %v615 = vld [vmem:[#allocation2 + $0xbe8] sm:$0xff]
        %v616 = vld [vmem:[#allocation2 + $0xbf0] sm:$0xff]
        %v617 = vld [vmem:[#allocation2 + $0xbf8] sm:$0xff]
        %v618 = vld [vmem:[#allocation2 + $0xc00] sm:$0xf]
        %v619 = vld [vmem:[#allocation2 + $0xc08] sm:$0xf]
        %v620 = vld [vmem:[#allocation2 + $0xc10] sm:$0xf]
        %v621 = vld [vmem:[#allocation2 + $0xc18] sm:$0xf]
        %v622 = vld [vmem:[#allocation2 + $0xc20] sm:$0xf]
        %v623 = vld [vmem:[#allocation2 + $0xc28] sm:$0xf]
        %v624 = vld [vmem:[#allocation2 + $0xc30] sm:$0xf]
        %v625 = vld [vmem:[#allocation2 + $0xc38] sm:$0xf]
        %v626 = vld [vmem:[#allocation2 + $0xc40] sm:$0xf]
        %v627 = vld [vmem:[#allocation2 + $0xc48] sm:$0xf]
        %v628 = vld [vmem:[#allocation2 + $0xc50] sm:$0xf]
        %v629 = vld [vmem:[#allocation2 + $0xc58] sm:$0xf]
        %v630 = vld [vmem:[#allocation2 + $0xc60] sm:$0xf]
        %v631 = vld [vmem:[#allocation2 + $0xc68] sm:$0xf]
        %v632 = vld [vmem:[#allocation2 + $0xc70] sm:$0xf]
        %v633 = vld [vmem:[#allocation2 + $0xc78] sm:$0xf]
        %v634 = vld [vmem:[%s199] sm:$0xff]
        %v635 = vld [vmem:[%s199 + $0x8] sm:$0xff]
        %v636 = vld [vmem:[%s199 + $0x10] sm:$0xff]
        %v637 = vld [vmem:[%s199 + $0x18] sm:$0xff]
        %v638 = vld [vmem:[%s199 + $0x20] sm:$0xff]
        %v639 = vld [vmem:[%s199 + $0x28] sm:$0xff]
        %v640 = vld [vmem:[%s199 + $0x30] sm:$0xff]
        %v641 = vld [vmem:[%s199 + $0x38] sm:$0xff]
        %v642 = vld [vmem:[%s199 + $0x40] sm:$0xff]
        %v643 = vld [vmem:[%s199 + $0x48] sm:$0xff]
        %v644 = vld [vmem:[%s199 + $0x50] sm:$0xff]
        %v645 = vld [vmem:[%s199 + $0x58] sm:$0xff]
        %v646 = vld [vmem:[%s199 + $0x60] sm:$0xff]
        %v647 = vld [vmem:[%s199 + $0x68] sm:$0xff]
        %v648 = vld [vmem:[%s199 + $0x70] sm:$0xff]
        %v649 = vld [vmem:[%s199 + $0x78] sm:$0xff]
        %v650 = vld [vmem:[%s199 + $0x80] sm:$0xff]
        %v651 = vld [vmem:[%s199 + $0x88] sm:$0xff]
        %v652 = vld [vmem:[%s199 + $0x90] sm:$0xff]
        %v653 = vld [vmem:[%s199 + $0x98] sm:$0xff]
        %v654 = vld [vmem:[%s199 + $0xa0] sm:$0xff]
        %v655 = vld [vmem:[%s199 + $0xa8] sm:$0xff]
        %v656 = vld [vmem:[%s199 + $0xb0] sm:$0xff]
        %v657 = vld [vmem:[%s199 + $0xb8] sm:$0xff]
        %v658 = vld [vmem:[%s199 + $0xc0] sm:$0xff]
        %v659 = vld [vmem:[%s199 + $0xc8] sm:$0xff]
        %v660 = vld [vmem:[%s199 + $0xd0] sm:$0xff]
        %v661 = vld [vmem:[%s199 + $0xd8] sm:$0xff]
        %v662 = vld [vmem:[%s199 + $0xe0] sm:$0xff]
        %v663 = vld [vmem:[%s199 + $0xe8] sm:$0xff]
        %v664 = vld [vmem:[%s199 + $0xf0] sm:$0xff]
        %v665 = vld [vmem:[%s199 + $0xf8] sm:$0xff]
        %v666 = vld [vmem:[%s199 + $0x100] sm:$0xff]
        %v667 = vld [vmem:[%s199 + $0x108] sm:$0xff]
        %v668 = vld [vmem:[%s199 + $0x110] sm:$0xff]
        %v669 = vld [vmem:[%s199 + $0x118] sm:$0xff]
        %v670 = vld [vmem:[%s199 + $0x120] sm:$0xff]
        %v671 = vld [vmem:[%s199 + $0x128] sm:$0xff]
        %v672 = vld [vmem:[%s199 + $0x130] sm:$0xff]
        %v673 = vld [vmem:[%s199 + $0x138] sm:$0xff]
        %v674 = vld [vmem:[%s199 + $0x140] sm:$0xff]
        %v675 = vld [vmem:[%s199 + $0x148] sm:$0xff]
        %v676 = vld [vmem:[%s199 + $0x150] sm:$0xff]
        %v677 = vld [vmem:[%s199 + $0x158] sm:$0xff]
        %v678 = vld [vmem:[%s199 + $0x160] sm:$0xff]
        %v679 = vld [vmem:[%s199 + $0x168] sm:$0xff]
        %v680 = vld [vmem:[%s199 + $0x170] sm:$0xff]
        %v681 = vld [vmem:[%s199 + $0x178] sm:$0xff]
        %v682 = vld [vmem:[%s199 + $0x180] sm:$0xff]
        %v683 = vld [vmem:[%s199 + $0x188] sm:$0xff]
        %v684 = vld [vmem:[%s199 + $0x190] sm:$0xff]
        %v685 = vld [vmem:[%s199 + $0x198] sm:$0xff]
        %v686 = vld [vmem:[%s199 + $0x1a0] sm:$0xff]
        %v687 = vld [vmem:[%s199 + $0x1a8] sm:$0xff]
        %v688 = vld [vmem:[%s199 + $0x1b0] sm:$0xff]
        %v689 = vld [vmem:[%s199 + $0x1b8] sm:$0xff]
        %v690 = vld [vmem:[%s199 + $0x1c0] sm:$0xff]
        %v691 = vld [vmem:[%s199 + $0x1c8] sm:$0xff]
        %v692 = vld [vmem:[%s199 + $0x1d0] sm:$0xff]
        %v693 = vld [vmem:[%s199 + $0x1d8] sm:$0xff]
        %v694 = vld [vmem:[%s199 + $0x1e0] sm:$0xff]
        %v695 = vld [vmem:[%s199 + $0x1e8] sm:$0xff]
        %v696 = vld [vmem:[%s199 + $0x1f0] sm:$0xff]
        %v697 = vld [vmem:[%s199 + $0x1f8] sm:$0xff]
        %v698 = vld [vmem:[%s199 + $0x200] sm:$0xff]
        %v699 = vld [vmem:[%s199 + $0x208] sm:$0xff]
        %v700 = vld [vmem:[%s199 + $0x210] sm:$0xff]
        %v701 = vld [vmem:[%s199 + $0x218] sm:$0xff]
        %v702 = vld [vmem:[%s199 + $0x220] sm:$0xff]
        %v703 = vld [vmem:[%s199 + $0x228] sm:$0xff]
        %v704 = vld [vmem:[%s199 + $0x230] sm:$0xff]
        %v705 = vld [vmem:[%s199 + $0x238] sm:$0xff]
        %v706 = vld [vmem:[%s199 + $0x240] sm:$0xff]
        %v707 = vld [vmem:[%s199 + $0x248] sm:$0xff]
        %v708 = vld [vmem:[%s199 + $0x250] sm:$0xff]
        %v709 = vld [vmem:[%s199 + $0x258] sm:$0xff]
        %v710 = vld [vmem:[%s199 + $0x260] sm:$0xff]
        %v711 = vld [vmem:[%s199 + $0x268] sm:$0xff]
        %v712 = vld [vmem:[%s199 + $0x270] sm:$0xff]
        %v713 = vld [vmem:[%s199 + $0x278] sm:$0xff]
        %v714 = vld [vmem:[%s199 + $0x280] sm:$0xff]
        %v715 = vld [vmem:[%s199 + $0x288] sm:$0xff]
        %v716 = vld [vmem:[%s199 + $0x290] sm:$0xff]
        %v717 = vld [vmem:[%s199 + $0x298] sm:$0xff]
        %v718 = vld [vmem:[%s199 + $0x2a0] sm:$0xff]
        %v719 = vld [vmem:[%s199 + $0x2a8] sm:$0xff]
        %v720 = vld [vmem:[%s199 + $0x2b0] sm:$0xff]
        %v721 = vld [vmem:[%s199 + $0x2b8] sm:$0xff]
        %v722 = vld [vmem:[%s199 + $0x2c0] sm:$0xff]
        %v723 = vld [vmem:[%s199 + $0x2c8] sm:$0xff]
        %v724 = vld [vmem:[%s199 + $0x2d0] sm:$0xff]
        %v725 = vld [vmem:[%s199 + $0x2d8] sm:$0xff]
        %v726 = vld [vmem:[%s199 + $0x2e0] sm:$0xff]
        %v727 = vld [vmem:[%s199 + $0x2e8] sm:$0xff]
        %v728 = vld [vmem:[%s199 + $0x2f0] sm:$0xff]
        %v729 = vld [vmem:[%s199 + $0x2f8] sm:$0xff]
        %v730 = vld [vmem:[%s199 + $0x300] sm:$0xff]
        %v731 = vld [vmem:[%s199 + $0x308] sm:$0xff]
        %v732 = vld [vmem:[%s199 + $0x310] sm:$0xff]
        %v733 = vld [vmem:[%s199 + $0x318] sm:$0xff]
        %v734 = vld [vmem:[%s199 + $0x320] sm:$0xff]
        %v735 = vld [vmem:[%s199 + $0x328] sm:$0xff]
        %v736 = vld [vmem:[%s199 + $0x330] sm:$0xff]
        %v737 = vld [vmem:[%s199 + $0x338] sm:$0xff]
        %v738 = vld [vmem:[%s199 + $0x340] sm:$0xff]
        %v739 = vld [vmem:[%s199 + $0x348] sm:$0xff]
        %v740 = vld [vmem:[%s199 + $0x350] sm:$0xff]
        %v741 = vld [vmem:[%s199 + $0x358] sm:$0xff]
        %v742 = vld [vmem:[%s199 + $0x360] sm:$0xff]
        %v743 = vld [vmem:[%s199 + $0x368] sm:$0xff]
        %v744 = vld [vmem:[%s199 + $0x370] sm:$0xff]
        %v745 = vld [vmem:[%s199 + $0x378] sm:$0xff]
        %v746 = vld [vmem:[%s199 + $0x380] sm:$0xff]
        %v747 = vld [vmem:[%s199 + $0x388] sm:$0xff]
        %v748 = vld [vmem:[%s199 + $0x390] sm:$0xff]
        %v749 = vld [vmem:[%s199 + $0x398] sm:$0xff]
        %v750 = vld [vmem:[%s199 + $0x3a0] sm:$0xff]
        %v751 = vld [vmem:[%s199 + $0x3a8] sm:$0xff]
        %v752 = vld [vmem:[%s199 + $0x3b0] sm:$0xff]
        %v753 = vld [vmem:[%s199 + $0x3b8] sm:$0xff]
        %v754 = vld [vmem:[%s199 + $0x3c0] sm:$0xff]
        %v755 = vld [vmem:[%s199 + $0x3c8] sm:$0xff]
        %v756 = vld [vmem:[%s199 + $0x3d0] sm:$0xff]
        %v757 = vld [vmem:[%s199 + $0x3d8] sm:$0xff]
        %v758 = vld [vmem:[%s199 + $0x3e0] sm:$0xff]
        %v759 = vld [vmem:[%s199 + $0x3e8] sm:$0xff]
        %v760 = vld [vmem:[%s199 + $0x3f0] sm:$0xff]
        %v761 = vld [vmem:[%s199 + $0x3f8] sm:$0xff]
        %v762 = vld [vmem:[%s199 + $0x400] sm:$0xff]
        %v763 = vld [vmem:[%s199 + $0x408] sm:$0xff]
        %v764 = vld [vmem:[%s199 + $0x410] sm:$0xff]
        %v765 = vld [vmem:[%s199 + $0x418] sm:$0xff]
        %v766 = vld [vmem:[%s199 + $0x420] sm:$0xff]
        %v767 = vld [vmem:[%s199 + $0x428] sm:$0xff]
        %v768 = vld [vmem:[%s199 + $0x430] sm:$0xff]
        %v769 = vld [vmem:[%s199 + $0x438] sm:$0xff]
        %v770 = vld [vmem:[%s199 + $0x440] sm:$0xff]
        %v771 = vld [vmem:[%s199 + $0x448] sm:$0xff]
        %v772 = vld [vmem:[%s199 + $0x450] sm:$0xff]
        %v773 = vld [vmem:[%s199 + $0x458] sm:$0xff]
        %v774 = vld [vmem:[%s199 + $0x460] sm:$0xff]
        %v775 = vld [vmem:[%s199 + $0x468] sm:$0xff]
        %v776 = vld [vmem:[%s199 + $0x470] sm:$0xff]
        %v777 = vld [vmem:[%s199 + $0x478] sm:$0xff]
        %v778 = vld [vmem:[%s199 + $0x480] sm:$0xff]
        %v779 = vld [vmem:[%s199 + $0x488] sm:$0xff]
        %v780 = vld [vmem:[%s199 + $0x490] sm:$0xff]
        %v781 = vld [vmem:[%s199 + $0x498] sm:$0xff]
        %v782 = vld [vmem:[%s199 + $0x4a0] sm:$0xff]
        %v783 = vld [vmem:[%s199 + $0x4a8] sm:$0xff]
        %v784 = vld [vmem:[%s199 + $0x4b0] sm:$0xff]
        %v785 = vld [vmem:[%s199 + $0x4b8] sm:$0xff]
        %v786 = vld [vmem:[%s199 + $0x4c0] sm:$0xff]
        %v787 = vld [vmem:[%s199 + $0x4c8] sm:$0xff]
        %v788 = vld [vmem:[%s199 + $0x4d0] sm:$0xff]
        %v789 = vld [vmem:[%s199 + $0x4d8] sm:$0xff]
        %v790 = vld [vmem:[%s199 + $0x4e0] sm:$0xff]
        %v791 = vld [vmem:[%s199 + $0x4e8] sm:$0xff]
        %v792 = vld [vmem:[%s199 + $0x4f0] sm:$0xff]
        %v793 = vld [vmem:[%s199 + $0x4f8] sm:$0xff]
        %v794 = vld [vmem:[%s199 + $0x500] sm:$0xff]
        %v795 = vld [vmem:[%s199 + $0x508] sm:$0xff]
        %v796 = vld [vmem:[%s199 + $0x510] sm:$0xff]
        %v797 = vld [vmem:[%s199 + $0x518] sm:$0xff]
        %v798 = vld [vmem:[%s199 + $0x520] sm:$0xff]
        %v799 = vld [vmem:[%s199 + $0x528] sm:$0xff]
        %v800 = vld [vmem:[%s199 + $0x530] sm:$0xff]
        %v801 = vld [vmem:[%s199 + $0x538] sm:$0xff]
        %v802 = vld [vmem:[%s199 + $0x540] sm:$0xff]
        %v803 = vld [vmem:[%s199 + $0x548] sm:$0xff]
        %v804 = vld [vmem:[%s199 + $0x550] sm:$0xff]
        %v805 = vld [vmem:[%s199 + $0x558] sm:$0xff]
        %v806 = vld [vmem:[%s199 + $0x560] sm:$0xff]
        %v807 = vld [vmem:[%s199 + $0x568] sm:$0xff]
        %v808 = vld [vmem:[%s199 + $0x570] sm:$0xff]
        %v809 = vld [vmem:[%s199 + $0x578] sm:$0xff]
        %v810 = vld [vmem:[%s199 + $0x580] sm:$0xff]
        %v811 = vld [vmem:[%s199 + $0x588] sm:$0xff]
        %v812 = vld [vmem:[%s199 + $0x590] sm:$0xff]
        %v813 = vld [vmem:[%s199 + $0x598] sm:$0xff]
        %v814 = vld [vmem:[%s199 + $0x5a0] sm:$0xff]
        %v815 = vld [vmem:[%s199 + $0x5a8] sm:$0xff]
        %v816 = vld [vmem:[%s199 + $0x5b0] sm:$0xff]
        %v817 = vld [vmem:[%s199 + $0x5b8] sm:$0xff]
        %v818 = vld [vmem:[%s199 + $0x5c0] sm:$0xff]
        %v819 = vld [vmem:[%s199 + $0x5c8] sm:$0xff]
        %v820 = vld [vmem:[%s199 + $0x5d0] sm:$0xff]
        %v821 = vld [vmem:[%s199 + $0x5d8] sm:$0xff]
        %v822 = vld [vmem:[%s199 + $0x5e0] sm:$0xff]
        %v823 = vld [vmem:[%s199 + $0x5e8] sm:$0xff]
        %v824 = vld [vmem:[%s199 + $0x5f0] sm:$0xff]
        %v825 = vld [vmem:[%s199 + $0x5f8] sm:$0xff]
        %v826 = vld [vmem:[%s199 + $0x600] sm:$0xff]
        %v827 = vld [vmem:[%s199 + $0x608] sm:$0xff]
        %v828 = vld [vmem:[%s199 + $0x610] sm:$0xff]
        %v829 = vld [vmem:[%s199 + $0x618] sm:$0xff]
        %v830 = vld [vmem:[%s199 + $0x620] sm:$0xff]
        %v831 = vld [vmem:[%s199 + $0x628] sm:$0xff]
        %v832 = vld [vmem:[%s199 + $0x630] sm:$0xff]
        %v833 = vld [vmem:[%s199 + $0x638] sm:$0xff]
        %v834 = vld [vmem:[%s199 + $0x640] sm:$0xff]
        %v835 = vld [vmem:[%s199 + $0x648] sm:$0xff]
        %v836 = vld [vmem:[%s199 + $0x650] sm:$0xff]
        %v837 = vld [vmem:[%s199 + $0x658] sm:$0xff]
        %v838 = vld [vmem:[%s199 + $0x660] sm:$0xff]
        %v839 = vld [vmem:[%s199 + $0x668] sm:$0xff]
        %v840 = vld [vmem:[%s199 + $0x670] sm:$0xff]
        %v841 = vld [vmem:[%s199 + $0x678] sm:$0xff]
        %v842 = vld [vmem:[%s199 + $0x680] sm:$0xff]
        %v843 = vld [vmem:[%s199 + $0x688] sm:$0xff]
        %v844 = vld [vmem:[%s199 + $0x690] sm:$0xff]
        %v845 = vld [vmem:[%s199 + $0x698] sm:$0xff]
        %v846 = vld [vmem:[%s199 + $0x6a0] sm:$0xff]
        %v847 = vld [vmem:[%s199 + $0x6a8] sm:$0xff]
        %v848 = vld [vmem:[%s199 + $0x6b0] sm:$0xff]
        %v849 = vld [vmem:[%s199 + $0x6b8] sm:$0xff]
        %v850 = vld [vmem:[%s199 + $0x6c0] sm:$0xff]
        %v851 = vld [vmem:[%s199 + $0x6c8] sm:$0xff]
        %v852 = vld [vmem:[%s199 + $0x6d0] sm:$0xff]
        %v853 = vld [vmem:[%s199 + $0x6d8] sm:$0xff]
        %v854 = vld [vmem:[%s199 + $0x6e0] sm:$0xff]
        %v855 = vld [vmem:[%s199 + $0x6e8] sm:$0xff]
        %v856 = vld [vmem:[%s199 + $0x6f0] sm:$0xff]
        %v857 = vld [vmem:[%s199 + $0x6f8] sm:$0xff]
        %v858 = vld [vmem:[%s199 + $0x700] sm:$0xff]
        %v859 = vld [vmem:[%s199 + $0x708] sm:$0xff]
        %v860 = vld [vmem:[%s199 + $0x710] sm:$0xff]
        %v861 = vld [vmem:[%s199 + $0x718] sm:$0xff]
        %v862 = vld [vmem:[%s199 + $0x720] sm:$0xff]
        %v863 = vld [vmem:[%s199 + $0x728] sm:$0xff]
        %v864 = vld [vmem:[%s199 + $0x730] sm:$0xff]
        %v865 = vld [vmem:[%s199 + $0x738] sm:$0xff]
        %v866 = vld [vmem:[%s199 + $0x740] sm:$0xff]
        %v867 = vld [vmem:[%s199 + $0x748] sm:$0xff]
        %v868 = vld [vmem:[%s199 + $0x750] sm:$0xff]
        %v869 = vld [vmem:[%s199 + $0x758] sm:$0xff]
        %v870 = vld [vmem:[%s199 + $0x760] sm:$0xff]
        %v871 = vld [vmem:[%s199 + $0x768] sm:$0xff]
        %v872 = vld [vmem:[%s199 + $0x770] sm:$0xff]
        %v873 = vld [vmem:[%s199 + $0x778] sm:$0xff]
        %v874 = vld [vmem:[%s199 + $0x780] sm:$0xff]
        %v875 = vld [vmem:[%s199 + $0x788] sm:$0xff]
        %v876 = vld [vmem:[%s199 + $0x790] sm:$0xff]
        %v877 = vld [vmem:[%s199 + $0x798] sm:$0xff]
        %v878 = vld [vmem:[%s199 + $0x7a0] sm:$0xff]
        %v879 = vld [vmem:[%s199 + $0x7a8] sm:$0xff]
        %v880 = vld [vmem:[%s199 + $0x7b0] sm:$0xff]
        %v881 = vld [vmem:[%s199 + $0x7b8] sm:$0xff]
        %v882 = vld [vmem:[%s199 + $0x7c0] sm:$0xff]
        %v883 = vld [vmem:[%s199 + $0x7c8] sm:$0xff]
        %v884 = vld [vmem:[%s199 + $0x7d0] sm:$0xff]
        %v885 = vld [vmem:[%s199 + $0x7d8] sm:$0xff]
        %v886 = vld [vmem:[%s199 + $0x7e0] sm:$0xff]
        %v887 = vld [vmem:[%s199 + $0x7e8] sm:$0xff]
        %v888 = vld [vmem:[%s199 + $0x7f0] sm:$0xff]
        %v889 = vld [vmem:[%s199 + $0x7f8] sm:$0xff]
        %v890 = vld [vmem:[%s207] sm:$0x1]
        %v892 = vlaneseq
        %v893 = vshrl.u32 %v892, 7
        %v894 = vsub.s32 0, %v893
        %v895 = vrot.slane %v890, %v894
        %897 = vmatprep.subr.mxu0 0.0
        %898 = vmatpush1.msra.mxu0 %v634
        %899 = vmatprep.subr.mxu0 0.0
        %900 = vmatpush1.msra.mxu0 %v635
        %901 = vmatprep.subr.mxu0 0.0
        %902 = vmatpush1.msra.mxu0 %v636
        %903 = vmatprep.subr.mxu0 0.0
        %904 = vmatpush1.msra.mxu0 %v637
        %905 = vmatprep.subr.mxu0 0.0
        %906 = vmatpush1.msra.mxu0 %v638
        %907 = vmatprep.subr.mxu0 0.0
        %908 = vmatpush1.msra.mxu0 %v639
        %909 = vmatprep.subr.mxu0 0.0
        %910 = vmatpush1.msra.mxu0 %v640
        %911 = vmatprep.subr.mxu0 0.0
        %912 = vmatpush1.msra.mxu0 %v641
        %913 = vmatprep.subr.mxu0 0.0
        %914 = vmatpush1.msra.mxu0 %v642
        %915 = vmatprep.subr.mxu0 0.0
        %916 = vmatpush1.msra.mxu0 %v643
        %917 = vmatprep.subr.mxu0 0.0
        %918 = vmatpush1.msra.mxu0 %v644
        %919 = vmatprep.subr.mxu0 0.0
        %920 = vmatpush1.msra.mxu0 %v645
        %921 = vmatprep.subr.mxu0 0.0
        %922 = vmatpush1.msra.mxu0 %v646
        %923 = vmatprep.subr.mxu0 0.0
        %924 = vmatpush1.msra.mxu0 %v647
        %925 = vmatprep.subr.mxu0 0.0
        %926 = vmatpush1.msra.mxu0 %v648
        %927 = vmatprep.subr.mxu0 0.0
        %928 = vmatpush1.msra.mxu0 %v649
        %929 = vmatprep.subr.mxu0 0.0
        %930 = vmatpush1.msra.mxu0 %v650
        %931 = vmatprep.subr.mxu0 0.0
        %932 = vmatpush1.msra.mxu0 %v651
        %933 = vmatprep.subr.mxu0 0.0
        %934 = vmatpush1.msra.mxu0 %v652
        %935 = vmatprep.subr.mxu0 0.0
        %936 = vmatpush1.msra.mxu0 %v653
        %937 = vmatprep.subr.mxu0 0.0
        %938 = vmatpush1.msra.mxu0 %v654
        %939 = vmatprep.subr.mxu0 0.0
        %940 = vmatpush1.msra.mxu0 %v655
        %941 = vmatprep.subr.mxu0 0.0
        %942 = vmatpush1.msra.mxu0 %v656
        %943 = vmatprep.subr.mxu0 0.0
        %944 = vmatpush1.msra.mxu0 %v657
        %945 = vmatprep.subr.mxu0 0.0
        %946 = vmatpush1.msra.mxu0 %v658
        %947 = vmatprep.subr.mxu0 0.0
        %948 = vmatpush1.msra.mxu0 %v659
        %949 = vmatprep.subr.mxu0 0.0
        %950 = vmatpush1.msra.mxu0 %v660
        %951 = vmatprep.subr.mxu0 0.0
        %952 = vmatpush1.msra.mxu0 %v661
        %953 = vmatprep.subr.mxu0 0.0
        %954 = vmatpush1.msra.mxu0 %v662
        %955 = vmatprep.subr.mxu0 0.0
        %956 = vmatpush1.msra.mxu0 %v663
        %957 = vmatprep.subr.mxu0 0.0
        %958 = vmatpush1.msra.mxu0 %v664
        %959 = vmatprep.subr.mxu0 0.0
        %960 = vmatpush1.msra.mxu0 %v665
        %961 = vmatprep.mubr.f32.mxu0 %v235
        %962 = vmatmul.mubr.f32.gmra.mrb[0].mxu0 %v234
        %v963 = vpop.f32.mrb[0].mxu0
        %v964 = vadd.f32 %v895, %v963
        %v965 = vpop.f32.mrb[0].mxu0
        %966 = vmatprep.mubr.f32.mxu0 %v251
        %967 = vmatmul.mubr.f32.gmra.mrb[0].mxu0 %v250
        %v968 = vpop.f32.mrb[0].mxu0
        %v969 = vadd.f32 %v895, %v968
        %v970 = vpop.f32.mrb[0].mxu0
        %971 = vmatprep.mubr.f32.mxu0 %v267
        %972 = vmatmul.mubr.f32.gmra.mrb[0].mxu0 %v266
        %v973 = vpop.f32.mrb[0].mxu0
        %v974 = vadd.f32 %v895, %v973
        %v975 = vpop.f32.mrb[0].mxu0
        %976 = vmatprep.mubr.f32.mxu0 %v283
        %977 = vmatmul.mubr.f32.gmra.mrb[0].mxu0 %v282
        %v978 = vpop.f32.mrb[0].mxu0
        %v979 = vadd.f32 %v895, %v978
        %v980 = vpop.f32.mrb[0].mxu0
        %981 = vmatprep.mubr.f32.mxu0 %v299
        %982 = vmatmul.mubr.f32.gmra.mrb[0].mxu0 %v298
        %v983 = vpop.f32.mrb[0].mxu0
        %v984 = vadd.f32 %v895, %v983
        %v985 = vpop.f32.mrb[0].mxu0
        %986 = vmatprep.mubr.f32.mxu0 %v315
        %987 = vmatmul.mubr.f32.gmra.mrb[0].mxu0 %v314
        %v988 = vpop.f32.mrb[0].mxu0
        %v989 = vadd.f32 %v895, %v988
        %v990 = vpop.f32.mrb[0].mxu0
        %991 = vmatprep.mubr.f32.mxu0 %v331
        %992 = vmatmul.mubr.f32.gmra.mrb[0].mxu0 %v330
        %v993 = vpop.f32.mrb[0].mxu0
        %v994 = vadd.f32 %v895, %v993
        %v995 = vpop.f32.mrb[0].mxu0
        %996 = vmatprep.mubr.f32.mxu0 %v347
        %997 = vmatmul.mubr.f32.gmra.mrb[0].mxu0 %v346
        %v998 = vpop.f32.mrb[0].mxu0
        %v999 = vadd.f32 %v895, %v998
        %v1000 = vpop.f32.mrb[0].mxu0
        %1001 = vmatprep.mubr.f32.mxu0 %v363
        %1002 = vmatmul.mubr.f32.gmra.mrb[0].mxu0 %v362
        %v1003 = vpop.f32.mrb[0].mxu0
        %v1004 = vadd.f32 %v895, %v1003
        %v1005 = vpop.f32.mrb[0].mxu0
        %1006 = vmatprep.mubr.f32.mxu0 %v379
        %1007 = vmatmul.mubr.f32.gmra.mrb[0].mxu0 %v378
        %v1008 = vpop.f32.mrb[0].mxu0
        %v1009 = vadd.f32 %v895, %v1008
        %v1010 = vpop.f32.mrb[0].mxu0
        %1011 = vmatprep.mubr.f32.mxu0 %v395
        %1012 = vmatmul.mubr.f32.gmra.mrb[0].mxu0 %v394
        %v1013 = vpop.f32.mrb[0].mxu0
        %v1014 = vadd.f32 %v895, %v1013
        %v1015 = vpop.f32.mrb[0].mxu0
        %1016 = vmatprep.mubr.f32.mxu0 %v411
        %1017 = vmatmul.mubr.f32.gmra.mrb[0].mxu0 %v410
        %v1018 = vpop.f32.mrb[0].mxu0
        %v1019 = vadd.f32 %v895, %v1018
        %v1020 = vpop.f32.mrb[0].mxu0
        %1021 = vmatprep.mubr.f32.mxu0 %v427
        %1022 = vmatmul.mubr.f32.gmra.mrb[0].mxu0 %v426
        %v1023 = vpop.f32.mrb[0].mxu0
        %v1024 = vadd.f32 %v895, %v1023
        %v1025 = vpop.f32.mrb[0].mxu0
        %1026 = vmatprep.mubr.f32.mxu0 %v443
        %1027 = vmatmul.mubr.f32.gmra.mrb[0].mxu0 %v442
        %v1028 = vpop.f32.mrb[0].mxu0
        %v1029 = vadd.f32 %v895, %v1028
        %v1030 = vpop.f32.mrb[0].mxu0
        %1031 = vmatprep.mubr.f32.mxu0 %v459
        %1032 = vmatmul.mubr.f32.gmra.mrb[0].mxu0 %v458
        %v1033 = vpop.f32.mrb[0].mxu0
        %v1034 = vadd.f32 %v895, %v1033
        %v1035 = vpop.f32.mrb[0].mxu0
        %1036 = vmatprep.mubr.f32.mxu0 %v475
        %1037 = vmatmul.mubr.f32.gmra.mrb[0].mxu0 %v474
        %v1038 = vpop.f32.mrb[0].mxu0
        %v1039 = vadd.f32 %v895, %v1038
        %v1040 = vpop.f32.mrb[0].mxu0
        %1041 = vmatprep.mubr.f32.mxu0 %v491
        %1042 = vmatmul.mubr.f32.gmra.mrb[0].mxu0 %v490
        %v1043 = vpop.f32.mrb[0].mxu0
        %v1044 = vadd.f32 %v895, %v1043
        %v1045 = vpop.f32.mrb[0].mxu0
        %1046 = vmatprep.mubr.f32.mxu0 %v507
        %1047 = vmatmul.mubr.f32.gmra.mrb[0].mxu0 %v506
        %v1048 = vpop.f32.mrb[0].mxu0
        %v1049 = vadd.f32 %v895, %v1048
        %v1050 = vpop.f32.mrb[0].mxu0
        %1051 = vmatprep.mubr.f32.mxu0 %v523
        %1052 = vmatmul.mubr.f32.gmra.mrb[0].mxu0 %v522
        %v1053 = vpop.f32.mrb[0].mxu0
        %v1054 = vadd.f32 %v895, %v1053
        %v1055 = vpop.f32.mrb[0].mxu0
        %1056 = vmatprep.mubr.f32.mxu0 %v539
        %1057 = vmatmul.mubr.f32.gmra.mrb[0].mxu0 %v538
        %v1058 = vpop.f32.mrb[0].mxu0
        %v1059 = vadd.f32 %v895, %v1058
        %v1060 = vpop.f32.mrb[0].mxu0
        %1061 = vmatprep.mubr.f32.mxu0 %v555
        %1062 = vmatmul.mubr.f32.gmra.mrb[0].mxu0 %v554
        %v1063 = vpop.f32.mrb[0].mxu0
        %v1064 = vadd.f32 %v895, %v1063
        %v1065 = vpop.f32.mrb[0].mxu0
        %1066 = vmatprep.mubr.f32.mxu0 %v571
        %1067 = vmatmul.mubr.f32.gmra.mrb[0].mxu0 %v570
        %v1068 = vpop.f32.mrb[0].mxu0
        %v1069 = vadd.f32 %v895, %v1068
        %v1070 = vpop.f32.mrb[0].mxu0
        %1071 = vmatprep.mubr.f32.mxu0 %v587
        %1072 = vmatmul.mubr.f32.gmra.mrb[0].mxu0 %v586
        %v1073 = vpop.f32.mrb[0].mxu0
        %v1074 = vadd.f32 %v895, %v1073
        %v1075 = vpop.f32.mrb[0].mxu0
        %1076 = vmatprep.mubr.f32.mxu0 %v603
        %1077 = vmatmul.mubr.f32.gmra.mrb[0].mxu0 %v602
        %v1078 = vpop.f32.mrb[0].mxu0
        %v1079 = vadd.f32 %v895, %v1078
        %v1080 = vpop.f32.mrb[0].mxu0
        %1081 = vmatprep.mubr.f32.mxu0 %v619
        %1082 = vmatmul.mubr.f32.gmra.mrb[0].mxu0 %v618
        %v1083 = vpop.f32.mrb[0].mxu0
        %v1084 = vadd.f32 %v895, %v1083
        %v1085 = vpop.f32.mrb[0].mxu0
        %1086 = vdwg.mxu0
        %1087 = vmatprep.subr.mxu0 0.0
        %1088 = vmatpush1.msra.mxu0 %v666
        %1089 = vmatprep.subr.mxu0 0.0
        %1090 = vmatpush1.msra.mxu0 %v667
        %1091 = vmatprep.subr.mxu0 0.0
        %1092 = vmatpush1.msra.mxu0 %v668
        %1093 = vmatprep.subr.mxu0 0.0
        %1094 = vmatpush1.msra.mxu0 %v669
        %1095 = vmatprep.subr.mxu0 0.0
        %1096 = vmatpush1.msra.mxu0 %v670
        %1097 = vmatprep.subr.mxu0 0.0
        %1098 = vmatpush1.msra.mxu0 %v671
        %1099 = vmatprep.subr.mxu0 0.0
        %1100 = vmatpush1.msra.mxu0 %v672
        %1101 = vmatprep.subr.mxu0 0.0
        %1102 = vmatpush1.msra.mxu0 %v673
        %1103 = vmatprep.subr.mxu0 0.0
        %1104 = vmatpush1.msra.mxu0 %v674
        %1105 = vmatprep.subr.mxu0 0.0
        %1106 = vmatpush1.msra.mxu0 %v675
        %1107 = vmatprep.subr.mxu0 0.0
        %1108 = vmatpush1.msra.mxu0 %v676
        %1109 = vmatprep.subr.mxu0 0.0
        %1110 = vmatpush1.msra.mxu0 %v677
        %1111 = vmatprep.subr.mxu0 0.0
        %1112 = vmatpush1.msra.mxu0 %v678
        %1113 = vmatprep.subr.mxu0 0.0
        %1114 = vmatpush1.msra.mxu0 %v679
        %1115 = vmatprep.subr.mxu0 0.0
        %1116 = vmatpush1.msra.mxu0 %v680
        %1117 = vmatprep.subr.mxu0 0.0
        %1118 = vmatpush1.msra.mxu0 %v681
        %1119 = vmatprep.subr.mxu0 0.0
        %1120 = vmatpush1.msra.mxu0 %v682
        %1121 = vmatprep.subr.mxu0 0.0
        %1122 = vmatpush1.msra.mxu0 %v683
        %1123 = vmatprep.subr.mxu0 0.0
        %1124 = vmatpush1.msra.mxu0 %v684
        %1125 = vmatprep.subr.mxu0 0.0
        %1126 = vmatpush1.msra.mxu0 %v685
        %1127 = vmatprep.subr.mxu0 0.0
        %1128 = vmatpush1.msra.mxu0 %v686
        %1129 = vmatprep.subr.mxu0 0.0
        %1130 = vmatpush1.msra.mxu0 %v687
        %1131 = vmatprep.subr.mxu0 0.0
        %1132 = vmatpush1.msra.mxu0 %v688
        %1133 = vmatprep.subr.mxu0 0.0
        %1134 = vmatpush1.msra.mxu0 %v689
        %1135 = vmatprep.subr.mxu0 0.0
        %1136 = vmatpush1.msra.mxu0 %v690
        %1137 = vmatprep.subr.mxu0 0.0
        %1138 = vmatpush1.msra.mxu0 %v691
        %1139 = vmatprep.subr.mxu0 0.0
        %1140 = vmatpush1.msra.mxu0 %v692
        %1141 = vmatprep.subr.mxu0 0.0
        %1142 = vmatpush1.msra.mxu0 %v693
        %1143 = vmatprep.subr.mxu0 0.0
        %1144 = vmatpush1.msra.mxu0 %v694
        %1145 = vmatprep.subr.mxu0 0.0
        %1146 = vmatpush1.msra.mxu0 %v695
        %1147 = vmatprep.subr.mxu0 0.0
        %1148 = vmatpush1.msra.mxu0 %v696
        %1149 = vmatprep.subr.mxu0 0.0
        %1150 = vmatpush1.msra.mxu0 %v697
        %1151 = vmatprep.mubr.f32.mxu0 %v237
        %1152 = vmatmul.mubr.f32.gmra.mrb[0].mxu0 %v236
        %v1153 = vpop.f32.mrb[0].mxu0
        %v1154 = vadd.f32 %v964, %v1153
        %v1155 = vpop.f32.mrb[0].mxu0
        %1156 = vmatprep.mubr.f32.mxu0 %v253
        %1157 = vmatmul.mubr.f32.gmra.mrb[0].mxu0 %v252
        %v1158 = vpop.f32.mrb[0].mxu0
        %v1159 = vadd.f32 %v969, %v1158
        %v1160 = vpop.f32.mrb[0].mxu0
        %1161 = vmatprep.mubr.f32.mxu0 %v269
        %1162 = vmatmul.mubr.f32.gmra.mrb[0].mxu0 %v268
        %v1163 = vpop.f32.mrb[0].mxu0
        %v1164 = vadd.f32 %v974, %v1163
        %v1165 = vpop.f32.mrb[0].mxu0
        %1166 = vmatprep.mubr.f32.mxu0 %v285
        %1167 = vmatmul.mubr.f32.gmra.mrb[0].mxu0 %v284
        %v1168 = vpop.f32.mrb[0].mxu0
        %v1169 = vadd.f32 %v979, %v1168
        %v1170 = vpop.f32.mrb[0].mxu0
        %1171 = vmatprep.mubr.f32.mxu0 %v301
        %1172 = vmatmul.mubr.f32.gmra.mrb[0].mxu0 %v300
        %v1173 = vpop.f32.mrb[0].mxu0
        %v1174 = vadd.f32 %v984, %v1173
        %v1175 = vpop.f32.mrb[0].mxu0
        %1176 = vmatprep.mubr.f32.mxu0 %v317
        %1177 = vmatmul.mubr.f32.gmra.mrb[0].mxu0 %v316
        %v1178 = vpop.f32.mrb[0].mxu0
        %v1179 = vadd.f32 %v989, %v1178
        %v1180 = vpop.f32.mrb[0].mxu0
        %1181 = vmatprep.mubr.f32.mxu0 %v333
        %1182 = vmatmul.mubr.f32.gmra.mrb[0].mxu0 %v332
        %v1183 = vpop.f32.mrb[0].mxu0
        %v1184 = vadd.f32 %v994, %v1183
        %v1185 = vpop.f32.mrb[0].mxu0
        %1186 = vmatprep.mubr.f32.mxu0 %v349
        %1187 = vmatmul.mubr.f32.gmra.mrb[0].mxu0 %v348
        %v1188 = vpop.f32.mrb[0].mxu0
        %v1189 = vadd.f32 %v999, %v1188
        %v1190 = vpop.f32.mrb[0].mxu0
        %1191 = vmatprep.mubr.f32.mxu0 %v365
        %1192 = vmatmul.mubr.f32.gmra.mrb[0].mxu0 %v364
        %v1193 = vpop.f32.mrb[0].mxu0
        %v1194 = vadd.f32 %v1004, %v1193
        %v1195 = vpop.f32.mrb[0].mxu0
        %1196 = vmatprep.mubr.f32.mxu0 %v381
        %1197 = vmatmul.mubr.f32.gmra.mrb[0].mxu0 %v380
        %v1198 = vpop.f32.mrb[0].mxu0
        %v1199 = vadd.f32 %v1009, %v1198
        %v1200 = vpop.f32.mrb[0].mxu0
        %1201 = vmatprep.mubr.f32.mxu0 %v397
        %1202 = vmatmul.mubr.f32.gmra.mrb[0].mxu0 %v396
        %v1203 = vpop.f32.mrb[0].mxu0
        %v1204 = vadd.f32 %v1014, %v1203
        %v1205 = vpop.f32.mrb[0].mxu0
        %1206 = vmatprep.mubr.f32.mxu0 %v413
        %1207 = vmatmul.mubr.f32.gmra.mrb[0].mxu0 %v412
        %v1208 = vpop.f32.mrb[0].mxu0
        %v1209 = vadd.f32 %v1019, %v1208
        %v1210 = vpop.f32.mrb[0].mxu0
        %1211 = vmatprep.mubr.f32.mxu0 %v429
        %1212 = vmatmul.mubr.f32.gmra.mrb[0].mxu0 %v428
        %v1213 = vpop.f32.mrb[0].mxu0
        %v1214 = vadd.f32 %v1024, %v1213
        %v1215 = vpop.f32.mrb[0].mxu0
        %1216 = vmatprep.mubr.f32.mxu0 %v445
        %1217 = vmatmul.mubr.f32.gmra.mrb[0].mxu0 %v444
        %v1218 = vpop.f32.mrb[0].mxu0
        %v1219 = vadd.f32 %v1029, %v1218
        %v1220 = vpop.f32.mrb[0].mxu0
        %1221 = vmatprep.mubr.f32.mxu0 %v461
        %1222 = vmatmul.mubr.f32.gmra.mrb[0].mxu0 %v460
        %v1223 = vpop.f32.mrb[0].mxu0
        %v1224 = vadd.f32 %v1034, %v1223
        %v1225 = vpop.f32.mrb[0].mxu0
        %1226 = vmatprep.mubr.f32.mxu0 %v477
        %1227 = vmatmul.mubr.f32.gmra.mrb[0].mxu0 %v476
        %v1228 = vpop.f32.mrb[0].mxu0
        %v1229 = vadd.f32 %v1039, %v1228
        %v1230 = vpop.f32.mrb[0].mxu0
        %1231 = vmatprep.mubr.f32.mxu0 %v493
        %1232 = vmatmul.mubr.f32.gmra.mrb[0].mxu0 %v492
        %v1233 = vpop.f32.mrb[0].mxu0
        %v1234 = vadd.f32 %v1044, %v1233
        %v1235 = vpop.f32.mrb[0].mxu0
        %1236 = vmatprep.mubr.f32.mxu0 %v509
        %1237 = vmatmul.mubr.f32.gmra.mrb[0].mxu0 %v508
        %v1238 = vpop.f32.mrb[0].mxu0
        %v1239 = vadd.f32 %v1049, %v1238
        %v1240 = vpop.f32.mrb[0].mxu0
        %1241 = vmatprep.mubr.f32.mxu0 %v525
        %1242 = vmatmul.mubr.f32.gmra.mrb[0].mxu0 %v524
        %v1243 = vpop.f32.mrb[0].mxu0
        %v1244 = vadd.f32 %v1054, %v1243
        %v1245 = vpop.f32.mrb[0].mxu0
        %1246 = vmatprep.mubr.f32.mxu0 %v541
        %1247 = vmatmul.mubr.f32.gmra.mrb[0].mxu0 %v540
        %v1248 = vpop.f32.mrb[0].mxu0
        %v1249 = vadd.f32 %v1059, %v1248
        %v1250 = vpop.f32.mrb[0].mxu0
        %1251 = vmatprep.mubr.f32.mxu0 %v557
        %1252 = vmatmul.mubr.f32.gmra.mrb[0].mxu0 %v556
        %v1253 = vpop.f32.mrb[0].mxu0
        %v1254 = vadd.f32 %v1064, %v1253
        %v1255 = vpop.f32.mrb[0].mxu0
        %1256 = vmatprep.mubr.f32.mxu0 %v573
        %1257 = vmatmul.mubr.f32.gmra.mrb[0].mxu0 %v572
        %v1258 = vpop.f32.mrb[0].mxu0
        %v1259 = vadd.f32 %v1069, %v1258
        %v1260 = vpop.f32.mrb[0].mxu0
        %1261 = vmatprep.mubr.f32.mxu0 %v589
        %1262 = vmatmul.mubr.f32.gmra.mrb[0].mxu0 %v588
        %v1263 = vpop.f32.mrb[0].mxu0
        %v1264 = vadd.f32 %v1074, %v1263
        %v1265 = vpop.f32.mrb[0].mxu0
        %1266 = vmatprep.mubr.f32.mxu0 %v605
        %1267 = vmatmul.mubr.f32.gmra.mrb[0].mxu0 %v604
        %v1268 = vpop.f32.mrb[0].mxu0
        %v1269 = vadd.f32 %v1079, %v1268
        %v1270 = vpop.f32.mrb[0].mxu0
        %1271 = vmatprep.mubr.f32.mxu0 %v621
        %1272 = vmatmul.mubr.f32.gmra.mrb[0].mxu0 %v620
        %v1273 = vpop.f32.mrb[0].mxu0
        %v1274 = vadd.f32 %v1084, %v1273
        %v1275 = vpop.f32.mrb[0].mxu0
        %1276 = vdwg.mxu0
        %1277 = vmatprep.subr.mxu0 0.0
        %1278 = vmatpush1.msra.mxu0 %v698
        %1279 = vmatprep.subr.mxu0 0.0
        %1280 = vmatpush1.msra.mxu0 %v699
        %1281 = vmatprep.subr.mxu0 0.0
        %1282 = vmatpush1.msra.mxu0 %v700
        %1283 = vmatprep.subr.mxu0 0.0
        %1284 = vmatpush1.msra.mxu0 %v701
        %1285 = vmatprep.subr.mxu0 0.0
        %1286 = vmatpush1.msra.mxu0 %v702
        %1287 = vmatprep.subr.mxu0 0.0
        %1288 = vmatpush1.msra.mxu0 %v703
        %1289 = vmatprep.subr.mxu0 0.0
        %1290 = vmatpush1.msra.mxu0 %v704
        %1291 = vmatprep.subr.mxu0 0.0
        %1292 = vmatpush1.msra.mxu0 %v705
        %1293 = vmatprep.subr.mxu0 0.0
        %1294 = vmatpush1.msra.mxu0 %v706
        %1295 = vmatprep.subr.mxu0 0.0
        %1296 = vmatpush1.msra.mxu0 %v707
        %1297 = vmatprep.subr.mxu0 0.0
        %1298 = vmatpush1.msra.mxu0 %v708
        %1299 = vmatprep.subr.mxu0 0.0
        %1300 = vmatpush1.msra.mxu0 %v709
        %1301 = vmatprep.subr.mxu0 0.0
        %1302 = vmatpush1.msra.mxu0 %v710
        %1303 = vmatprep.subr.mxu0 0.0
        %1304 = vmatpush1.msra.mxu0 %v711
        %1305 = vmatprep.subr.mxu0 0.0
        %1306 = vmatpush1.msra.mxu0 %v712
        %1307 = vmatprep.subr.mxu0 0.0
        %1308 = vmatpush1.msra.mxu0 %v713
        %1309 = vmatprep.subr.mxu0 0.0
        %1310 = vmatpush1.msra.mxu0 %v714
        %1311 = vmatprep.subr.mxu0 0.0
        %1312 = vmatpush1.msra.mxu0 %v715
        %1313 = vmatprep.subr.mxu0 0.0
        %1314 = vmatpush1.msra.mxu0 %v716
        %1315 = vmatprep.subr.mxu0 0.0
        %1316 = vmatpush1.msra.mxu0 %v717
        %1317 = vmatprep.subr.mxu0 0.0
        %1318 = vmatpush1.msra.mxu0 %v718
        %1319 = vmatprep.subr.mxu0 0.0
        %1320 = vmatpush1.msra.mxu0 %v719
        %1321 = vmatprep.subr.mxu0 0.0
        %1322 = vmatpush1.msra.mxu0 %v720
        %1323 = vmatprep.subr.mxu0 0.0
        %1324 = vmatpush1.msra.mxu0 %v721
        %1325 = vmatprep.subr.mxu0 0.0
        %1326 = vmatpush1.msra.mxu0 %v722
        %1327 = vmatprep.subr.mxu0 0.0
        %1328 = vmatpush1.msra.mxu0 %v723
        %1329 = vmatprep.subr.mxu0 0.0
        %1330 = vmatpush1.msra.mxu0 %v724
        %1331 = vmatprep.subr.mxu0 0.0
        %1332 = vmatpush1.msra.mxu0 %v725
        %1333 = vmatprep.subr.mxu0 0.0
        %1334 = vmatpush1.msra.mxu0 %v726
        %1335 = vmatprep.subr.mxu0 0.0
        %1336 = vmatpush1.msra.mxu0 %v727
        %1337 = vmatprep.subr.mxu0 0.0
        %1338 = vmatpush1.msra.mxu0 %v728
        %1339 = vmatprep.subr.mxu0 0.0
        %1340 = vmatpush1.msra.mxu0 %v729
        %1341 = vmatprep.mubr.f32.mxu0 %v239
        %1342 = vmatmul.mubr.f32.gmra.mrb[0].mxu0 %v238
        %v1343 = vpop.f32.mrb[0].mxu0
        %v1344 = vadd.f32 %v1154, %v1343
        %v1345 = vpop.f32.mrb[0].mxu0
        %1346 = vmatprep.mubr.f32.mxu0 %v255
        %1347 = vmatmul.mubr.f32.gmra.mrb[0].mxu0 %v254
        %v1348 = vpop.f32.mrb[0].mxu0
        %v1349 = vadd.f32 %v1159, %v1348
        %v1350 = vpop.f32.mrb[0].mxu0
        %1351 = vmatprep.mubr.f32.mxu0 %v271
        %1352 = vmatmul.mubr.f32.gmra.mrb[0].mxu0 %v270
        %v1353 = vpop.f32.mrb[0].mxu0
        %v1354 = vadd.f32 %v1164, %v1353
        %v1355 = vpop.f32.mrb[0].mxu0
        %1356 = vmatprep.mubr.f32.mxu0 %v287
        %1357 = vmatmul.mubr.f32.gmra.mrb[0].mxu0 %v286
        %v1358 = vpop.f32.mrb[0].mxu0
        %v1359 = vadd.f32 %v1169, %v1358
        %v1360 = vpop.f32.mrb[0].mxu0
        %1361 = vmatprep.mubr.f32.mxu0 %v303
        %1362 = vmatmul.mubr.f32.gmra.mrb[0].mxu0 %v302
        %v1363 = vpop.f32.mrb[0].mxu0
        %v1364 = vadd.f32 %v1174, %v1363
        %v1365 = vpop.f32.mrb[0].mxu0
        %1366 = vmatprep.mubr.f32.mxu0 %v319
        %1367 = vmatmul.mubr.f32.gmra.mrb[0].mxu0 %v318
        %v1368 = vpop.f32.mrb[0].mxu0
        %v1369 = vadd.f32 %v1179, %v1368
        %v1370 = vpop.f32.mrb[0].mxu0
        %1371 = vmatprep.mubr.f32.mxu0 %v335
        %1372 = vmatmul.mubr.f32.gmra.mrb[0].mxu0 %v334
        %v1373 = vpop.f32.mrb[0].mxu0
        %v1374 = vadd.f32 %v1184, %v1373
        %v1375 = vpop.f32.mrb[0].mxu0
        %1376 = vmatprep.mubr.f32.mxu0 %v351
        %1377 = vmatmul.mubr.f32.gmra.mrb[0].mxu0 %v350
        %v1378 = vpop.f32.mrb[0].mxu0
        %v1379 = vadd.f32 %v1189, %v1378
        %v1380 = vpop.f32.mrb[0].mxu0
        %1381 = vmatprep.mubr.f32.mxu0 %v367
        %1382 = vmatmul.mubr.f32.gmra.mrb[0].mxu0 %v366
        %v1383 = vpop.f32.mrb[0].mxu0
        %v1384 = vadd.f32 %v1194, %v1383
        %v1385 = vpop.f32.mrb[0].mxu0
        %1386 = vmatprep.mubr.f32.mxu0 %v383
        %1387 = vmatmul.mubr.f32.gmra.mrb[0].mxu0 %v382
        %v1388 = vpop.f32.mrb[0].mxu0
        %v1389 = vadd.f32 %v1199, %v1388
        %v1390 = vpop.f32.mrb[0].mxu0
        %1391 = vmatprep.mubr.f32.mxu0 %v399
        %1392 = vmatmul.mubr.f32.gmra.mrb[0].mxu0 %v398
        %v1393 = vpop.f32.mrb[0].mxu0
        %v1394 = vadd.f32 %v1204, %v1393
        %v1395 = vpop.f32.mrb[0].mxu0
        %1396 = vmatprep.mubr.f32.mxu0 %v415
        %1397 = vmatmul.mubr.f32.gmra.mrb[0].mxu0 %v414
        %v1398 = vpop.f32.mrb[0].mxu0
        %v1399 = vadd.f32 %v1209, %v1398
        %v1400 = vpop.f32.mrb[0].mxu0
        %1401 = vmatprep.mubr.f32.mxu0 %v431
        %1402 = vmatmul.mubr.f32.gmra.mrb[0].mxu0 %v430
        %v1403 = vpop.f32.mrb[0].mxu0
        %v1404 = vadd.f32 %v1214, %v1403
        %v1405 = vpop.f32.mrb[0].mxu0
        %1406 = vmatprep.mubr.f32.mxu0 %v447
        %1407 = vmatmul.mubr.f32.gmra.mrb[0].mxu0 %v446
        %v1408 = vpop.f32.mrb[0].mxu0
        %v1409 = vadd.f32 %v1219, %v1408
        %v1410 = vpop.f32.mrb[0].mxu0
        %1411 = vmatprep.mubr.f32.mxu0 %v463
        %1412 = vmatmul.mubr.f32.gmra.mrb[0].mxu0 %v462
        %v1413 = vpop.f32.mrb[0].mxu0
        %v1414 = vadd.f32 %v1224, %v1413
        %v1415 = vpop.f32.mrb[0].mxu0
        %1416 = vmatprep.mubr.f32.mxu0 %v479
        %1417 = vmatmul.mubr.f32.gmra.mrb[0].mxu0 %v478
        %v1418 = vpop.f32.mrb[0].mxu0
        %v1419 = vadd.f32 %v1229, %v1418
        %v1420 = vpop.f32.mrb[0].mxu0
        %1421 = vmatprep.mubr.f32.mxu0 %v495
        %1422 = vmatmul.mubr.f32.gmra.mrb[0].mxu0 %v494
        %v1423 = vpop.f32.mrb[0].mxu0
        %v1424 = vadd.f32 %v1234, %v1423
        %v1425 = vpop.f32.mrb[0].mxu0
        %1426 = vmatprep.mubr.f32.mxu0 %v511
        %1427 = vmatmul.mubr.f32.gmra.mrb[0].mxu0 %v510
        %v1428 = vpop.f32.mrb[0].mxu0
        %v1429 = vadd.f32 %v1239, %v1428
        %v1430 = vpop.f32.mrb[0].mxu0
        %1431 = vmatprep.mubr.f32.mxu0 %v527
        %1432 = vmatmul.mubr.f32.gmra.mrb[0].mxu0 %v526
        %v1433 = vpop.f32.mrb[0].mxu0
        %v1434 = vadd.f32 %v1244, %v1433
        %v1435 = vpop.f32.mrb[0].mxu0
        %1436 = vmatprep.mubr.f32.mxu0 %v543
        %1437 = vmatmul.mubr.f32.gmra.mrb[0].mxu0 %v542
        %v1438 = vpop.f32.mrb[0].mxu0
        %v1439 = vadd.f32 %v1249, %v1438
        %v1440 = vpop.f32.mrb[0].mxu0
        %1441 = vmatprep.mubr.f32.mxu0 %v559
        %1442 = vmatmul.mubr.f32.gmra.mrb[0].mxu0 %v558
        %v1443 = vpop.f32.mrb[0].mxu0
        %v1444 = vadd.f32 %v1254, %v1443
        %v1445 = vpop.f32.mrb[0].mxu0
        %1446 = vmatprep.mubr.f32.mxu0 %v575
        %1447 = vmatmul.mubr.f32.gmra.mrb[0].mxu0 %v574
        %v1448 = vpop.f32.mrb[0].mxu0
        %v1449 = vadd.f32 %v1259, %v1448
        %v1450 = vpop.f32.mrb[0].mxu0
        %1451 = vmatprep.mubr.f32.mxu0 %v591
        %1452 = vmatmul.mubr.f32.gmra.mrb[0].mxu0 %v590
        %v1453 = vpop.f32.mrb[0].mxu0
        %v1454 = vadd.f32 %v1264, %v1453
        %v1455 = vpop.f32.mrb[0].mxu0
        %1456 = vmatprep.mubr.f32.mxu0 %v607
        %1457 = vmatmul.mubr.f32.gmra.mrb[0].mxu0 %v606
        %v1458 = vpop.f32.mrb[0].mxu0
        %v1459 = vadd.f32 %v1269, %v1458
        %v1460 = vpop.f32.mrb[0].mxu0
        %1461 = vmatprep.mubr.f32.mxu0 %v623
        %1462 = vmatmul.mubr.f32.gmra.mrb[0].mxu0 %v622
        %v1463 = vpop.f32.mrb[0].mxu0
        %v1464 = vadd.f32 %v1274, %v1463
        %v1465 = vpop.f32.mrb[0].mxu0
        %1466 = vdwg.mxu0
        %1467 = vmatprep.subr.mxu0 0.0
        %1468 = vmatpush1.msra.mxu0 %v730
        %1469 = vmatprep.subr.mxu0 0.0
        %1470 = vmatpush1.msra.mxu0 %v731
        %1471 = vmatprep.subr.mxu0 0.0
        %1472 = vmatpush1.msra.mxu0 %v732
        %1473 = vmatprep.subr.mxu0 0.0
        %1474 = vmatpush1.msra.mxu0 %v733
        %1475 = vmatprep.subr.mxu0 0.0
        %1476 = vmatpush1.msra.mxu0 %v734
        %1477 = vmatprep.subr.mxu0 0.0
        %1478 = vmatpush1.msra.mxu0 %v735
        %1479 = vmatprep.subr.mxu0 0.0
        %1480 = vmatpush1.msra.mxu0 %v736
        %1481 = vmatprep.subr.mxu0 0.0
        %1482 = vmatpush1.msra.mxu0 %v737
        %1483 = vmatprep.subr.mxu0 0.0
        %1484 = vmatpush1.msra.mxu0 %v738
        %1485 = vmatprep.subr.mxu0 0.0
        %1486 = vmatpush1.msra.mxu0 %v739
        %1487 = vmatprep.subr.mxu0 0.0
        %1488 = vmatpush1.msra.mxu0 %v740
        %1489 = vmatprep.subr.mxu0 0.0
        %1490 = vmatpush1.msra.mxu0 %v741
        %1491 = vmatprep.subr.mxu0 0.0
        %1492 = vmatpush1.msra.mxu0 %v742
        %1493 = vmatprep.subr.mxu0 0.0
        %1494 = vmatpush1.msra.mxu0 %v743
        %1495 = vmatprep.subr.mxu0 0.0
        %1496 = vmatpush1.msra.mxu0 %v744
        %1497 = vmatprep.subr.mxu0 0.0
        %1498 = vmatpush1.msra.mxu0 %v745
        %1499 = vmatprep.subr.mxu0 0.0
        %1500 = vmatpush1.msra.mxu0 %v746
        %1501 = vmatprep.subr.mxu0 0.0
        %1502 = vmatpush1.msra.mxu0 %v747
        %1503 = vmatprep.subr.mxu0 0.0
        %1504 = vmatpush1.msra.mxu0 %v748
        %1505 = vmatprep.subr.mxu0 0.0
        %1506 = vmatpush1.msra.mxu0 %v749
        %1507 = vmatprep.subr.mxu0 0.0
        %1508 = vmatpush1.msra.mxu0 %v750
        %1509 = vmatprep.subr.mxu0 0.0
        %1510 = vmatpush1.msra.mxu0 %v751
        %1511 = vmatprep.subr.mxu0 0.0
        %1512 = vmatpush1.msra.mxu0 %v752
        %1513 = vmatprep.subr.mxu0 0.0
        %1514 = vmatpush1.msra.mxu0 %v753
        %1515 = vmatprep.subr.mxu0 0.0
        %1516 = vmatpush1.msra.mxu0 %v754
        %1517 = vmatprep.subr.mxu0 0.0
        %1518 = vmatpush1.msra.mxu0 %v755
        %1519 = vmatprep.subr.mxu0 0.0
        %1520 = vmatpush1.msra.mxu0 %v756
        %1521 = vmatprep.subr.mxu0 0.0
        %1522 = vmatpush1.msra.mxu0 %v757
        %1523 = vmatprep.subr.mxu0 0.0
        %1524 = vmatpush1.msra.mxu0 %v758
        %1525 = vmatprep.subr.mxu0 0.0
        %1526 = vmatpush1.msra.mxu0 %v759
        %1527 = vmatprep.subr.mxu0 0.0
        %1528 = vmatpush1.msra.mxu0 %v760
        %1529 = vmatprep.subr.mxu0 0.0
        %1530 = vmatpush1.msra.mxu0 %v761
        %1531 = vmatprep.mubr.f32.mxu0 %v241
        %1532 = vmatmul.mubr.f32.gmra.mrb[0].mxu0 %v240
        %v1533 = vpop.f32.mrb[0].mxu0
        %v1534 = vadd.f32 %v1344, %v1533
        %v1535 = vpop.f32.mrb[0].mxu0
        %1536 = vmatprep.mubr.f32.mxu0 %v257
        %1537 = vmatmul.mubr.f32.gmra.mrb[0].mxu0 %v256
        %v1538 = vpop.f32.mrb[0].mxu0
        %v1539 = vadd.f32 %v1349, %v1538
        %v1540 = vpop.f32.mrb[0].mxu0
        %1541 = vmatprep.mubr.f32.mxu0 %v273
        %1542 = vmatmul.mubr.f32.gmra.mrb[0].mxu0 %v272
        %v1543 = vpop.f32.mrb[0].mxu0
        %v1544 = vadd.f32 %v1354, %v1543
        %v1545 = vpop.f32.mrb[0].mxu0
        %1546 = vmatprep.mubr.f32.mxu0 %v289
        %1547 = vmatmul.mubr.f32.gmra.mrb[0].mxu0 %v288
        %v1548 = vpop.f32.mrb[0].mxu0
        %v1549 = vadd.f32 %v1359, %v1548
        %v1550 = vpop.f32.mrb[0].mxu0
        %1551 = vmatprep.mubr.f32.mxu0 %v305
        %1552 = vmatmul.mubr.f32.gmra.mrb[0].mxu0 %v304
        %v1553 = vpop.f32.mrb[0].mxu0
        %v1554 = vadd.f32 %v1364, %v1553
        %v1555 = vpop.f32.mrb[0].mxu0
        %1556 = vmatprep.mubr.f32.mxu0 %v321
        %1557 = vmatmul.mubr.f32.gmra.mrb[0].mxu0 %v320
        %v1558 = vpop.f32.mrb[0].mxu0
        %v1559 = vadd.f32 %v1369, %v1558
        %v1560 = vpop.f32.mrb[0].mxu0
        %1561 = vmatprep.mubr.f32.mxu0 %v337
        %1562 = vmatmul.mubr.f32.gmra.mrb[0].mxu0 %v336
        %v1563 = vpop.f32.mrb[0].mxu0
        %v1564 = vadd.f32 %v1374, %v1563
        %v1565 = vpop.f32.mrb[0].mxu0
        %1566 = vmatprep.mubr.f32.mxu0 %v353
        %1567 = vmatmul.mubr.f32.gmra.mrb[0].mxu0 %v352
        %v1568 = vpop.f32.mrb[0].mxu0
        %v1569 = vadd.f32 %v1379, %v1568
        %v1570 = vpop.f32.mrb[0].mxu0
        %1571 = vmatprep.mubr.f32.mxu0 %v369
        %1572 = vmatmul.mubr.f32.gmra.mrb[0].mxu0 %v368
        %v1573 = vpop.f32.mrb[0].mxu0
        %v1574 = vadd.f32 %v1384, %v1573
        %v1575 = vpop.f32.mrb[0].mxu0
        %1576 = vmatprep.mubr.f32.mxu0 %v385
        %1577 = vmatmul.mubr.f32.gmra.mrb[0].mxu0 %v384
        %v1578 = vpop.f32.mrb[0].mxu0
        %v1579 = vadd.f32 %v1389, %v1578
        %v1580 = vpop.f32.mrb[0].mxu0
        %1581 = vmatprep.mubr.f32.mxu0 %v401
        %1582 = vmatmul.mubr.f32.gmra.mrb[0].mxu0 %v400
        %v1583 = vpop.f32.mrb[0].mxu0
        %v1584 = vadd.f32 %v1394, %v1583
        %v1585 = vpop.f32.mrb[0].mxu0
        %1586 = vmatprep.mubr.f32.mxu0 %v417
        %1587 = vmatmul.mubr.f32.gmra.mrb[0].mxu0 %v416
        %v1588 = vpop.f32.mrb[0].mxu0
        %v1589 = vadd.f32 %v1399, %v1588
        %v1590 = vpop.f32.mrb[0].mxu0
        %1591 = vmatprep.mubr.f32.mxu0 %v433
        %1592 = vmatmul.mubr.f32.gmra.mrb[0].mxu0 %v432
        %v1593 = vpop.f32.mrb[0].mxu0
        %v1594 = vadd.f32 %v1404, %v1593
        %v1595 = vpop.f32.mrb[0].mxu0
        %1596 = vmatprep.mubr.f32.mxu0 %v449
        %1597 = vmatmul.mubr.f32.gmra.mrb[0].mxu0 %v448
        %v1598 = vpop.f32.mrb[0].mxu0
        %v1599 = vadd.f32 %v1409, %v1598
        %v1600 = vpop.f32.mrb[0].mxu0
        %1601 = vmatprep.mubr.f32.mxu0 %v465
        %1602 = vmatmul.mubr.f32.gmra.mrb[0].mxu0 %v464
        %v1603 = vpop.f32.mrb[0].mxu0
        %v1604 = vadd.f32 %v1414, %v1603
        %v1605 = vpop.f32.mrb[0].mxu0
        %1606 = vmatprep.mubr.f32.mxu0 %v481
        %1607 = vmatmul.mubr.f32.gmra.mrb[0].mxu0 %v480
        %v1608 = vpop.f32.mrb[0].mxu0
        %v1609 = vadd.f32 %v1419, %v1608
        %v1610 = vpop.f32.mrb[0].mxu0
        %1611 = vmatprep.mubr.f32.mxu0 %v497
        %1612 = vmatmul.mubr.f32.gmra.mrb[0].mxu0 %v496
        %v1613 = vpop.f32.mrb[0].mxu0
        %v1614 = vadd.f32 %v1424, %v1613
        %v1615 = vpop.f32.mrb[0].mxu0
        %1616 = vmatprep.mubr.f32.mxu0 %v513
        %1617 = vmatmul.mubr.f32.gmra.mrb[0].mxu0 %v512
        %v1618 = vpop.f32.mrb[0].mxu0
        %v1619 = vadd.f32 %v1429, %v1618
        %v1620 = vpop.f32.mrb[0].mxu0
        %1621 = vmatprep.mubr.f32.mxu0 %v529
        %1622 = vmatmul.mubr.f32.gmra.mrb[0].mxu0 %v528
        %v1623 = vpop.f32.mrb[0].mxu0
        %v1624 = vadd.f32 %v1434, %v1623
        %v1625 = vpop.f32.mrb[0].mxu0
        %1626 = vmatprep.mubr.f32.mxu0 %v545
        %1627 = vmatmul.mubr.f32.gmra.mrb[0].mxu0 %v544
        %v1628 = vpop.f32.mrb[0].mxu0
        %v1629 = vadd.f32 %v1439, %v1628
        %v1630 = vpop.f32.mrb[0].mxu0
        %1631 = vmatprep.mubr.f32.mxu0 %v561
        %1632 = vmatmul.mubr.f32.gmra.mrb[0].mxu0 %v560
        %v1633 = vpop.f32.mrb[0].mxu0
        %v1634 = vadd.f32 %v1444, %v1633
        %v1635 = vpop.f32.mrb[0].mxu0
        %1636 = vmatprep.mubr.f32.mxu0 %v577
        %1637 = vmatmul.mubr.f32.gmra.mrb[0].mxu0 %v576
        %v1638 = vpop.f32.mrb[0].mxu0
        %v1639 = vadd.f32 %v1449, %v1638
        %v1640 = vpop.f32.mrb[0].mxu0
        %1641 = vmatprep.mubr.f32.mxu0 %v593
        %1642 = vmatmul.mubr.f32.gmra.mrb[0].mxu0 %v592
        %v1643 = vpop.f32.mrb[0].mxu0
        %v1644 = vadd.f32 %v1454, %v1643
        %v1645 = vpop.f32.mrb[0].mxu0
        %1646 = vmatprep.mubr.f32.mxu0 %v609
        %1647 = vmatmul.mubr.f32.gmra.mrb[0].mxu0 %v608
        %v1648 = vpop.f32.mrb[0].mxu0
        %v1649 = vadd.f32 %v1459, %v1648
        %v1650 = vpop.f32.mrb[0].mxu0
        %1651 = vmatprep.mubr.f32.mxu0 %v625
        %1652 = vmatmul.mubr.f32.gmra.mrb[0].mxu0 %v624
        %v1653 = vpop.f32.mrb[0].mxu0
        %v1654 = vadd.f32 %v1464, %v1653
        %v1655 = vpop.f32.mrb[0].mxu0
        %1656 = vdwg.mxu0
        %1657 = vmatprep.subr.mxu0 0.0
        %1658 = vmatpush1.msra.mxu0 %v762
        %1659 = vmatprep.subr.mxu0 0.0
        %1660 = vmatpush1.msra.mxu0 %v763
        %1661 = vmatprep.subr.mxu0 0.0
        %1662 = vmatpush1.msra.mxu0 %v764
        %1663 = vmatprep.subr.mxu0 0.0
        %1664 = vmatpush1.msra.mxu0 %v765
        %1665 = vmatprep.subr.mxu0 0.0
        %1666 = vmatpush1.msra.mxu0 %v766
        %1667 = vmatprep.subr.mxu0 0.0
        %1668 = vmatpush1.msra.mxu0 %v767
        %1669 = vmatprep.subr.mxu0 0.0
        %1670 = vmatpush1.msra.mxu0 %v768
        %1671 = vmatprep.subr.mxu0 0.0
        %1672 = vmatpush1.msra.mxu0 %v769
        %1673 = vmatprep.subr.mxu0 0.0
        %1674 = vmatpush1.msra.mxu0 %v770
        %1675 = vmatprep.subr.mxu0 0.0
        %1676 = vmatpush1.msra.mxu0 %v771
        %1677 = vmatprep.subr.mxu0 0.0
        %1678 = vmatpush1.msra.mxu0 %v772
        %1679 = vmatprep.subr.mxu0 0.0
        %1680 = vmatpush1.msra.mxu0 %v773
        %1681 = vmatprep.subr.mxu0 0.0
        %1682 = vmatpush1.msra.mxu0 %v774
        %1683 = vmatprep.subr.mxu0 0.0
        %1684 = vmatpush1.msra.mxu0 %v775
        %1685 = vmatprep.subr.mxu0 0.0
        %1686 = vmatpush1.msra.mxu0 %v776
        %1687 = vmatprep.subr.mxu0 0.0
        %1688 = vmatpush1.msra.mxu0 %v777
        %1689 = vmatprep.subr.mxu0 0.0
        %1690 = vmatpush1.msra.mxu0 %v778
        %1691 = vmatprep.subr.mxu0 0.0
        %1692 = vmatpush1.msra.mxu0 %v779
        %1693 = vmatprep.subr.mxu0 0.0
        %1694 = vmatpush1.msra.mxu0 %v780
        %1695 = vmatprep.subr.mxu0 0.0
        %1696 = vmatpush1.msra.mxu0 %v781
        %1697 = vmatprep.subr.mxu0 0.0
        %1698 = vmatpush1.msra.mxu0 %v782
        %1699 = vmatprep.subr.mxu0 0.0
        %1700 = vmatpush1.msra.mxu0 %v783
        %1701 = vmatprep.subr.mxu0 0.0
        %1702 = vmatpush1.msra.mxu0 %v784
        %1703 = vmatprep.subr.mxu0 0.0
        %1704 = vmatpush1.msra.mxu0 %v785
        %1705 = vmatprep.subr.mxu0 0.0
        %1706 = vmatpush1.msra.mxu0 %v786
        %1707 = vmatprep.subr.mxu0 0.0
        %1708 = vmatpush1.msra.mxu0 %v787
        %1709 = vmatprep.subr.mxu0 0.0
        %1710 = vmatpush1.msra.mxu0 %v788
        %1711 = vmatprep.subr.mxu0 0.0
        %1712 = vmatpush1.msra.mxu0 %v789
        %1713 = vmatprep.subr.mxu0 0.0
        %1714 = vmatpush1.msra.mxu0 %v790
        %1715 = vmatprep.subr.mxu0 0.0
        %1716 = vmatpush1.msra.mxu0 %v791
        %1717 = vmatprep.subr.mxu0 0.0
        %1718 = vmatpush1.msra.mxu0 %v792
        %1719 = vmatprep.subr.mxu0 0.0
        %1720 = vmatpush1.msra.mxu0 %v793
        %1721 = vmatprep.mubr.f32.mxu0 %v243
        %1722 = vmatmul.mubr.f32.gmra.mrb[0].mxu0 %v242
        %v1723 = vpop.f32.mrb[0].mxu0
        %v1724 = vadd.f32 %v1534, %v1723
        %v1725 = vpop.f32.mrb[0].mxu0
        %1726 = vmatprep.mubr.f32.mxu0 %v259
        %1727 = vmatmul.mubr.f32.gmra.mrb[0].mxu0 %v258
        %v1728 = vpop.f32.mrb[0].mxu0
        %v1729 = vadd.f32 %v1539, %v1728
        %v1730 = vpop.f32.mrb[0].mxu0
        %1731 = vmatprep.mubr.f32.mxu0 %v275
        %1732 = vmatmul.mubr.f32.gmra.mrb[0].mxu0 %v274
        %v1733 = vpop.f32.mrb[0].mxu0
        %v1734 = vadd.f32 %v1544, %v1733
        %v1735 = vpop.f32.mrb[0].mxu0
        %1736 = vmatprep.mubr.f32.mxu0 %v291
        %1737 = vmatmul.mubr.f32.gmra.mrb[0].mxu0 %v290
        %v1738 = vpop.f32.mrb[0].mxu0
        %v1739 = vadd.f32 %v1549, %v1738
        %v1740 = vpop.f32.mrb[0].mxu0
        %1741 = vmatprep.mubr.f32.mxu0 %v307
        %1742 = vmatmul.mubr.f32.gmra.mrb[0].mxu0 %v306
        %v1743 = vpop.f32.mrb[0].mxu0
        %v1744 = vadd.f32 %v1554, %v1743
        %v1745 = vpop.f32.mrb[0].mxu0
        %1746 = vmatprep.mubr.f32.mxu0 %v323
        %1747 = vmatmul.mubr.f32.gmra.mrb[0].mxu0 %v322
        %v1748 = vpop.f32.mrb[0].mxu0
        %v1749 = vadd.f32 %v1559, %v1748
        %v1750 = vpop.f32.mrb[0].mxu0
        %1751 = vmatprep.mubr.f32.mxu0 %v339
        %1752 = vmatmul.mubr.f32.gmra.mrb[0].mxu0 %v338
        %v1753 = vpop.f32.mrb[0].mxu0
        %v1754 = vadd.f32 %v1564, %v1753
        %v1755 = vpop.f32.mrb[0].mxu0
        %1756 = vmatprep.mubr.f32.mxu0 %v355
        %1757 = vmatmul.mubr.f32.gmra.mrb[0].mxu0 %v354
        %v1758 = vpop.f32.mrb[0].mxu0
        %v1759 = vadd.f32 %v1569, %v1758
        %v1760 = vpop.f32.mrb[0].mxu0
        %1761 = vmatprep.mubr.f32.mxu0 %v371
        %1762 = vmatmul.mubr.f32.gmra.mrb[0].mxu0 %v370
        %v1763 = vpop.f32.mrb[0].mxu0
        %v1764 = vadd.f32 %v1574, %v1763
        %v1765 = vpop.f32.mrb[0].mxu0
        %1766 = vmatprep.mubr.f32.mxu0 %v387
        %1767 = vmatmul.mubr.f32.gmra.mrb[0].mxu0 %v386
        %v1768 = vpop.f32.mrb[0].mxu0
        %v1769 = vadd.f32 %v1579, %v1768
        %v1770 = vpop.f32.mrb[0].mxu0
        %1771 = vmatprep.mubr.f32.mxu0 %v403
        %1772 = vmatmul.mubr.f32.gmra.mrb[0].mxu0 %v402
        %v1773 = vpop.f32.mrb[0].mxu0
        %v1774 = vadd.f32 %v1584, %v1773
        %v1775 = vpop.f32.mrb[0].mxu0
        %1776 = vmatprep.mubr.f32.mxu0 %v419
        %1777 = vmatmul.mubr.f32.gmra.mrb[0].mxu0 %v418
        %v1778 = vpop.f32.mrb[0].mxu0
        %v1779 = vadd.f32 %v1589, %v1778
        %v1780 = vpop.f32.mrb[0].mxu0
        %1781 = vmatprep.mubr.f32.mxu0 %v435
        %1782 = vmatmul.mubr.f32.gmra.mrb[0].mxu0 %v434
        %v1783 = vpop.f32.mrb[0].mxu0
        %v1784 = vadd.f32 %v1594, %v1783
        %v1785 = vpop.f32.mrb[0].mxu0
        %1786 = vmatprep.mubr.f32.mxu0 %v451
        %1787 = vmatmul.mubr.f32.gmra.mrb[0].mxu0 %v450
        %v1788 = vpop.f32.mrb[0].mxu0
        %v1789 = vadd.f32 %v1599, %v1788
        %v1790 = vpop.f32.mrb[0].mxu0
        %1791 = vmatprep.mubr.f32.mxu0 %v467
        %1792 = vmatmul.mubr.f32.gmra.mrb[0].mxu0 %v466
        %v1793 = vpop.f32.mrb[0].mxu0
        %v1794 = vadd.f32 %v1604, %v1793
        %v1795 = vpop.f32.mrb[0].mxu0
        %1796 = vmatprep.mubr.f32.mxu0 %v483
        %1797 = vmatmul.mubr.f32.gmra.mrb[0].mxu0 %v482
        %v1798 = vpop.f32.mrb[0].mxu0
        %v1799 = vadd.f32 %v1609, %v1798
        %v1800 = vpop.f32.mrb[0].mxu0
        %1801 = vmatprep.mubr.f32.mxu0 %v499
        %1802 = vmatmul.mubr.f32.gmra.mrb[0].mxu0 %v498
        %v1803 = vpop.f32.mrb[0].mxu0
        %v1804 = vadd.f32 %v1614, %v1803
        %v1805 = vpop.f32.mrb[0].mxu0
        %1806 = vmatprep.mubr.f32.mxu0 %v515
        %1807 = vmatmul.mubr.f32.gmra.mrb[0].mxu0 %v514
        %v1808 = vpop.f32.mrb[0].mxu0
        %v1809 = vadd.f32 %v1619, %v1808
        %v1810 = vpop.f32.mrb[0].mxu0
        %1811 = vmatprep.mubr.f32.mxu0 %v531
        %1812 = vmatmul.mubr.f32.gmra.mrb[0].mxu0 %v530
        %v1813 = vpop.f32.mrb[0].mxu0
        %v1814 = vadd.f32 %v1624, %v1813
        %v1815 = vpop.f32.mrb[0].mxu0
        %1816 = vmatprep.mubr.f32.mxu0 %v547
        %1817 = vmatmul.mubr.f32.gmra.mrb[0].mxu0 %v546
        %v1818 = vpop.f32.mrb[0].mxu0
        %v1819 = vadd.f32 %v1629, %v1818
        %v1820 = vpop.f32.mrb[0].mxu0
        %1821 = vmatprep.mubr.f32.mxu0 %v563
        %1822 = vmatmul.mubr.f32.gmra.mrb[0].mxu0 %v562
        %v1823 = vpop.f32.mrb[0].mxu0
        %v1824 = vadd.f32 %v1634, %v1823
        %v1825 = vpop.f32.mrb[0].mxu0
        %1826 = vmatprep.mubr.f32.mxu0 %v579
        %1827 = vmatmul.mubr.f32.gmra.mrb[0].mxu0 %v578
        %v1828 = vpop.f32.mrb[0].mxu0
        %v1829 = vadd.f32 %v1639, %v1828
        %v1830 = vpop.f32.mrb[0].mxu0
        %1831 = vmatprep.mubr.f32.mxu0 %v595
        %1832 = vmatmul.mubr.f32.gmra.mrb[0].mxu0 %v594
        %v1833 = vpop.f32.mrb[0].mxu0
        %v1834 = vadd.f32 %v1644, %v1833
        %v1835 = vpop.f32.mrb[0].mxu0
        %1836 = vmatprep.mubr.f32.mxu0 %v611
        %1837 = vmatmul.mubr.f32.gmra.mrb[0].mxu0 %v610
        %v1838 = vpop.f32.mrb[0].mxu0
        %v1839 = vadd.f32 %v1649, %v1838
        %v1840 = vpop.f32.mrb[0].mxu0
        %1841 = vmatprep.mubr.f32.mxu0 %v627
        %1842 = vmatmul.mubr.f32.gmra.mrb[0].mxu0 %v626
        %v1843 = vpop.f32.mrb[0].mxu0
        %v1844 = vadd.f32 %v1654, %v1843
        %v1845 = vpop.f32.mrb[0].mxu0
        %1846 = vdwg.mxu0
        %1847 = vmatprep.subr.mxu0 0.0
        %1848 = vmatpush1.msra.mxu0 %v794
        %1849 = vmatprep.subr.mxu0 0.0
        %1850 = vmatpush1.msra.mxu0 %v795
        %1851 = vmatprep.subr.mxu0 0.0
        %1852 = vmatpush1.msra.mxu0 %v796
        %1853 = vmatprep.subr.mxu0 0.0
        %1854 = vmatpush1.msra.mxu0 %v797
        %1855 = vmatprep.subr.mxu0 0.0
        %1856 = vmatpush1.msra.mxu0 %v798
        %1857 = vmatprep.subr.mxu0 0.0
        %1858 = vmatpush1.msra.mxu0 %v799
        %1859 = vmatprep.subr.mxu0 0.0
        %1860 = vmatpush1.msra.mxu0 %v800
        %1861 = vmatprep.subr.mxu0 0.0
        %1862 = vmatpush1.msra.mxu0 %v801
        %1863 = vmatprep.subr.mxu0 0.0
        %1864 = vmatpush1.msra.mxu0 %v802
        %1865 = vmatprep.subr.mxu0 0.0
        %1866 = vmatpush1.msra.mxu0 %v803
        %1867 = vmatprep.subr.mxu0 0.0
        %1868 = vmatpush1.msra.mxu0 %v804
        %1869 = vmatprep.subr.mxu0 0.0
        %1870 = vmatpush1.msra.mxu0 %v805
        %1871 = vmatprep.subr.mxu0 0.0
        %1872 = vmatpush1.msra.mxu0 %v806
        %1873 = vmatprep.subr.mxu0 0.0
        %1874 = vmatpush1.msra.mxu0 %v807
        %1875 = vmatprep.subr.mxu0 0.0
        %1876 = vmatpush1.msra.mxu0 %v808
        %1877 = vmatprep.subr.mxu0 0.0
        %1878 = vmatpush1.msra.mxu0 %v809
        %1879 = vmatprep.subr.mxu0 0.0
        %1880 = vmatpush1.msra.mxu0 %v810
        %1881 = vmatprep.subr.mxu0 0.0
        %1882 = vmatpush1.msra.mxu0 %v811
        %1883 = vmatprep.subr.mxu0 0.0
        %1884 = vmatpush1.msra.mxu0 %v812
        %1885 = vmatprep.subr.mxu0 0.0
        %1886 = vmatpush1.msra.mxu0 %v813
        %1887 = vmatprep.subr.mxu0 0.0
        %1888 = vmatpush1.msra.mxu0 %v814
        %1889 = vmatprep.subr.mxu0 0.0
        %1890 = vmatpush1.msra.mxu0 %v815
        %1891 = vmatprep.subr.mxu0 0.0
        %1892 = vmatpush1.msra.mxu0 %v816
        %1893 = vmatprep.subr.mxu0 0.0
        %1894 = vmatpush1.msra.mxu0 %v817
        %1895 = vmatprep.subr.mxu0 0.0
        %1896 = vmatpush1.msra.mxu0 %v818
        %1897 = vmatprep.subr.mxu0 0.0
        %1898 = vmatpush1.msra.mxu0 %v819
        %1899 = vmatprep.subr.mxu0 0.0
        %1900 = vmatpush1.msra.mxu0 %v820
        %1901 = vmatprep.subr.mxu0 0.0
        %1902 = vmatpush1.msra.mxu0 %v821
        %1903 = vmatprep.subr.mxu0 0.0
        %1904 = vmatpush1.msra.mxu0 %v822
        %1905 = vmatprep.subr.mxu0 0.0
        %1906 = vmatpush1.msra.mxu0 %v823
        %1907 = vmatprep.subr.mxu0 0.0
        %1908 = vmatpush1.msra.mxu0 %v824
        %1909 = vmatprep.subr.mxu0 0.0
        %1910 = vmatpush1.msra.mxu0 %v825
        %1911 = vmatprep.mubr.f32.mxu0 %v245
        %1912 = vmatmul.mubr.f32.gmra.mrb[0].mxu0 %v244
        %v1913 = vpop.f32.mrb[0].mxu0
        %v1914 = vadd.f32 %v1724, %v1913
        %v1915 = vpop.f32.mrb[0].mxu0
        %1916 = vmatprep.mubr.f32.mxu0 %v261
        %1917 = vmatmul.mubr.f32.gmra.mrb[0].mxu0 %v260
        %v1918 = vpop.f32.mrb[0].mxu0
        %v1919 = vadd.f32 %v1729, %v1918
        %v1920 = vpop.f32.mrb[0].mxu0
        %1921 = vmatprep.mubr.f32.mxu0 %v277
        %1922 = vmatmul.mubr.f32.gmra.mrb[0].mxu0 %v276
        %v1923 = vpop.f32.mrb[0].mxu0
        %v1924 = vadd.f32 %v1734, %v1923
        %v1925 = vpop.f32.mrb[0].mxu0
        %1926 = vmatprep.mubr.f32.mxu0 %v293
        %1927 = vmatmul.mubr.f32.gmra.mrb[0].mxu0 %v292
        %v1928 = vpop.f32.mrb[0].mxu0
        %v1929 = vadd.f32 %v1739, %v1928
        %v1930 = vpop.f32.mrb[0].mxu0
        %1931 = vmatprep.mubr.f32.mxu0 %v309
        %1932 = vmatmul.mubr.f32.gmra.mrb[0].mxu0 %v308
        %v1933 = vpop.f32.mrb[0].mxu0
        %v1934 = vadd.f32 %v1744, %v1933
        %v1935 = vpop.f32.mrb[0].mxu0
        %1936 = vmatprep.mubr.f32.mxu0 %v325
        %1937 = vmatmul.mubr.f32.gmra.mrb[0].mxu0 %v324
        %v1938 = vpop.f32.mrb[0].mxu0
        %v1939 = vadd.f32 %v1749, %v1938
        %v1940 = vpop.f32.mrb[0].mxu0
        %1941 = vmatprep.mubr.f32.mxu0 %v341
        %1942 = vmatmul.mubr.f32.gmra.mrb[0].mxu0 %v340
        %v1943 = vpop.f32.mrb[0].mxu0
        %v1944 = vadd.f32 %v1754, %v1943
        %v1945 = vpop.f32.mrb[0].mxu0
        %1946 = vmatprep.mubr.f32.mxu0 %v357
        %1947 = vmatmul.mubr.f32.gmra.mrb[0].mxu0 %v356
        %v1948 = vpop.f32.mrb[0].mxu0
        %v1949 = vadd.f32 %v1759, %v1948
        %v1950 = vpop.f32.mrb[0].mxu0
        %1951 = vmatprep.mubr.f32.mxu0 %v373
        %1952 = vmatmul.mubr.f32.gmra.mrb[0].mxu0 %v372
        %v1953 = vpop.f32.mrb[0].mxu0
        %v1954 = vadd.f32 %v1764, %v1953
        %v1955 = vpop.f32.mrb[0].mxu0
        %1956 = vmatprep.mubr.f32.mxu0 %v389
        %1957 = vmatmul.mubr.f32.gmra.mrb[0].mxu0 %v388
        %v1958 = vpop.f32.mrb[0].mxu0
        %v1959 = vadd.f32 %v1769, %v1958
        %v1960 = vpop.f32.mrb[0].mxu0
        %1961 = vmatprep.mubr.f32.mxu0 %v405
        %1962 = vmatmul.mubr.f32.gmra.mrb[0].mxu0 %v404
        %v1963 = vpop.f32.mrb[0].mxu0
        %v1964 = vadd.f32 %v1774, %v1963
        %v1965 = vpop.f32.mrb[0].mxu0
        %1966 = vmatprep.mubr.f32.mxu0 %v421
        %1967 = vmatmul.mubr.f32.gmra.mrb[0].mxu0 %v420
        %v1968 = vpop.f32.mrb[0].mxu0
        %v1969 = vadd.f32 %v1779, %v1968
        %v1970 = vpop.f32.mrb[0].mxu0
        %1971 = vmatprep.mubr.f32.mxu0 %v437
        %1972 = vmatmul.mubr.f32.gmra.mrb[0].mxu0 %v436
        %v1973 = vpop.f32.mrb[0].mxu0
        %v1974 = vadd.f32 %v1784, %v1973
        %v1975 = vpop.f32.mrb[0].mxu0
        %1976 = vmatprep.mubr.f32.mxu0 %v453
        %1977 = vmatmul.mubr.f32.gmra.mrb[0].mxu0 %v452
        %v1978 = vpop.f32.mrb[0].mxu0
        %v1979 = vadd.f32 %v1789, %v1978
        %v1980 = vpop.f32.mrb[0].mxu0
        %1981 = vmatprep.mubr.f32.mxu0 %v469
        %1982 = vmatmul.mubr.f32.gmra.mrb[0].mxu0 %v468
        %v1983 = vpop.f32.mrb[0].mxu0
        %v1984 = vadd.f32 %v1794, %v1983
        %v1985 = vpop.f32.mrb[0].mxu0
        %1986 = vmatprep.mubr.f32.mxu0 %v485
        %1987 = vmatmul.mubr.f32.gmra.mrb[0].mxu0 %v484
        %v1988 = vpop.f32.mrb[0].mxu0
        %v1989 = vadd.f32 %v1799, %v1988
        %v1990 = vpop.f32.mrb[0].mxu0
        %1991 = vmatprep.mubr.f32.mxu0 %v501
        %1992 = vmatmul.mubr.f32.gmra.mrb[0].mxu0 %v500
        %v1993 = vpop.f32.mrb[0].mxu0
        %v1994 = vadd.f32 %v1804, %v1993
        %v1995 = vpop.f32.mrb[0].mxu0
        %1996 = vmatprep.mubr.f32.mxu0 %v517
        %1997 = vmatmul.mubr.f32.gmra.mrb[0].mxu0 %v516
        %v1998 = vpop.f32.mrb[0].mxu0
        %v1999 = vadd.f32 %v1809, %v1998
        %v2000 = vpop.f32.mrb[0].mxu0
        %2001 = vmatprep.mubr.f32.mxu0 %v533
        %2002 = vmatmul.mubr.f32.gmra.mrb[0].mxu0 %v532
        %v2003 = vpop.f32.mrb[0].mxu0
        %v2004 = vadd.f32 %v1814, %v2003
        %v2005 = vpop.f32.mrb[0].mxu0
        %2006 = vmatprep.mubr.f32.mxu0 %v549
        %2007 = vmatmul.mubr.f32.gmra.mrb[0].mxu0 %v548
        %v2008 = vpop.f32.mrb[0].mxu0
        %v2009 = vadd.f32 %v1819, %v2008
        %v2010 = vpop.f32.mrb[0].mxu0
        %2011 = vmatprep.mubr.f32.mxu0 %v565
        %2012 = vmatmul.mubr.f32.gmra.mrb[0].mxu0 %v564
        %v2013 = vpop.f32.mrb[0].mxu0
        %v2014 = vadd.f32 %v1824, %v2013
        %v2015 = vpop.f32.mrb[0].mxu0
        %2016 = vmatprep.mubr.f32.mxu0 %v581
        %2017 = vmatmul.mubr.f32.gmra.mrb[0].mxu0 %v580
        %v2018 = vpop.f32.mrb[0].mxu0
        %v2019 = vadd.f32 %v1829, %v2018
        %v2020 = vpop.f32.mrb[0].mxu0
        %2021 = vmatprep.mubr.f32.mxu0 %v597
        %2022 = vmatmul.mubr.f32.gmra.mrb[0].mxu0 %v596
        %v2023 = vpop.f32.mrb[0].mxu0
        %v2024 = vadd.f32 %v1834, %v2023
        %v2025 = vpop.f32.mrb[0].mxu0
        %2026 = vmatprep.mubr.f32.mxu0 %v613
        %2027 = vmatmul.mubr.f32.gmra.mrb[0].mxu0 %v612
        %v2028 = vpop.f32.mrb[0].mxu0
        %v2029 = vadd.f32 %v1839, %v2028
        %v2030 = vpop.f32.mrb[0].mxu0
        %2031 = vmatprep.mubr.f32.mxu0 %v629
        %2032 = vmatmul.mubr.f32.gmra.mrb[0].mxu0 %v628
        %v2033 = vpop.f32.mrb[0].mxu0
        %v2034 = vadd.f32 %v1844, %v2033
        %v2035 = vpop.f32.mrb[0].mxu0
        %2036 = vdwg.mxu0
        %2037 = vmatprep.subr.mxu0 0.0
        %2038 = vmatpush1.msra.mxu0 %v826
        %2039 = vmatprep.subr.mxu0 0.0
        %2040 = vmatpush1.msra.mxu0 %v827
        %2041 = vmatprep.subr.mxu0 0.0
        %2042 = vmatpush1.msra.mxu0 %v828
        %2043 = vmatprep.subr.mxu0 0.0
        %2044 = vmatpush1.msra.mxu0 %v829
        %2045 = vmatprep.subr.mxu0 0.0
        %2046 = vmatpush1.msra.mxu0 %v830
        %2047 = vmatprep.subr.mxu0 0.0
        %2048 = vmatpush1.msra.mxu0 %v831
        %2049 = vmatprep.subr.mxu0 0.0
        %2050 = vmatpush1.msra.mxu0 %v832
        %2051 = vmatprep.subr.mxu0 0.0
        %2052 = vmatpush1.msra.mxu0 %v833
        %2053 = vmatprep.subr.mxu0 0.0
        %2054 = vmatpush1.msra.mxu0 %v834
        %2055 = vmatprep.subr.mxu0 0.0
        %2056 = vmatpush1.msra.mxu0 %v835
        %2057 = vmatprep.subr.mxu0 0.0
        %2058 = vmatpush1.msra.mxu0 %v836
        %2059 = vmatprep.subr.mxu0 0.0
        %2060 = vmatpush1.msra.mxu0 %v837
        %2061 = vmatprep.subr.mxu0 0.0
        %2062 = vmatpush1.msra.mxu0 %v838
        %2063 = vmatprep.subr.mxu0 0.0
        %2064 = vmatpush1.msra.mxu0 %v839
        %2065 = vmatprep.subr.mxu0 0.0
        %2066 = vmatpush1.msra.mxu0 %v840
        %2067 = vmatprep.subr.mxu0 0.0
        %2068 = vmatpush1.msra.mxu0 %v841
        %2069 = vmatprep.subr.mxu0 0.0
        %2070 = vmatpush1.msra.mxu0 %v842
        %2071 = vmatprep.subr.mxu0 0.0
        %2072 = vmatpush1.msra.mxu0 %v843
        %2073 = vmatprep.subr.mxu0 0.0
        %2074 = vmatpush1.msra.mxu0 %v844
        %2075 = vmatprep.subr.mxu0 0.0
        %2076 = vmatpush1.msra.mxu0 %v845
        %2077 = vmatprep.subr.mxu0 0.0
        %2078 = vmatpush1.msra.mxu0 %v846
        %2079 = vmatprep.subr.mxu0 0.0
        %2080 = vmatpush1.msra.mxu0 %v847
        %2081 = vmatprep.subr.mxu0 0.0
        %2082 = vmatpush1.msra.mxu0 %v848
        %2083 = vmatprep.subr.mxu0 0.0
        %2084 = vmatpush1.msra.mxu0 %v849
        %2085 = vmatprep.subr.mxu0 0.0
        %2086 = vmatpush1.msra.mxu0 %v850
        %2087 = vmatprep.subr.mxu0 0.0
        %2088 = vmatpush1.msra.mxu0 %v851
        %2089 = vmatprep.subr.mxu0 0.0
        %2090 = vmatpush1.msra.mxu0 %v852
        %2091 = vmatprep.subr.mxu0 0.0
        %2092 = vmatpush1.msra.mxu0 %v853
        %2093 = vmatprep.subr.mxu0 0.0
        %2094 = vmatpush1.msra.mxu0 %v854
        %2095 = vmatprep.subr.mxu0 0.0
        %2096 = vmatpush1.msra.mxu0 %v855
        %2097 = vmatprep.subr.mxu0 0.0
        %2098 = vmatpush1.msra.mxu0 %v856
        %2099 = vmatprep.subr.mxu0 0.0
        %2100 = vmatpush1.msra.mxu0 %v857
        %2101 = vmatprep.mubr.f32.mxu0 %v247
        %2102 = vmatmul.mubr.f32.gmra.mrb[0].mxu0 %v246
        %v2103 = vpop.f32.mrb[0].mxu0
        %v2104 = vadd.f32 %v1914, %v2103
        %v2105 = vpop.f32.mrb[0].mxu0
        %2106 = vmatprep.mubr.f32.mxu0 %v263
        %2107 = vmatmul.mubr.f32.gmra.mrb[0].mxu0 %v262
        %v2108 = vpop.f32.mrb[0].mxu0
        %v2109 = vadd.f32 %v1919, %v2108
        %v2110 = vpop.f32.mrb[0].mxu0
        %2111 = vmatprep.mubr.f32.mxu0 %v279
        %2112 = vmatmul.mubr.f32.gmra.mrb[0].mxu0 %v278
        %v2113 = vpop.f32.mrb[0].mxu0
        %v2114 = vadd.f32 %v1924, %v2113
        %v2115 = vpop.f32.mrb[0].mxu0
        %2116 = vmatprep.mubr.f32.mxu0 %v295
        %2117 = vmatmul.mubr.f32.gmra.mrb[0].mxu0 %v294
        %v2118 = vpop.f32.mrb[0].mxu0
        %v2119 = vadd.f32 %v1929, %v2118
        %v2120 = vpop.f32.mrb[0].mxu0
        %2121 = vmatprep.mubr.f32.mxu0 %v311
        %2122 = vmatmul.mubr.f32.gmra.mrb[0].mxu0 %v310
        %v2123 = vpop.f32.mrb[0].mxu0
        %v2124 = vadd.f32 %v1934, %v2123
        %v2125 = vpop.f32.mrb[0].mxu0
        %2126 = vmatprep.mubr.f32.mxu0 %v327
        %2127 = vmatmul.mubr.f32.gmra.mrb[0].mxu0 %v326
        %v2128 = vpop.f32.mrb[0].mxu0
        %v2129 = vadd.f32 %v1939, %v2128
        %v2130 = vpop.f32.mrb[0].mxu0
        %2131 = vmatprep.mubr.f32.mxu0 %v343
        %2132 = vmatmul.mubr.f32.gmra.mrb[0].mxu0 %v342
        %v2133 = vpop.f32.mrb[0].mxu0
        %v2134 = vadd.f32 %v1944, %v2133
        %v2135 = vpop.f32.mrb[0].mxu0
        %2136 = vmatprep.mubr.f32.mxu0 %v359
        %2137 = vmatmul.mubr.f32.gmra.mrb[0].mxu0 %v358
        %v2138 = vpop.f32.mrb[0].mxu0
        %v2139 = vadd.f32 %v1949, %v2138
        %v2140 = vpop.f32.mrb[0].mxu0
        %2141 = vmatprep.mubr.f32.mxu0 %v375
        %2142 = vmatmul.mubr.f32.gmra.mrb[0].mxu0 %v374
        %v2143 = vpop.f32.mrb[0].mxu0
        %v2144 = vadd.f32 %v1954, %v2143
        %v2145 = vpop.f32.mrb[0].mxu0
        %2146 = vmatprep.mubr.f32.mxu0 %v391
        %2147 = vmatmul.mubr.f32.gmra.mrb[0].mxu0 %v390
        %v2148 = vpop.f32.mrb[0].mxu0
        %v2149 = vadd.f32 %v1959, %v2148
        %v2150 = vpop.f32.mrb[0].mxu0
        %2151 = vmatprep.mubr.f32.mxu0 %v407
        %2152 = vmatmul.mubr.f32.gmra.mrb[0].mxu0 %v406
        %v2153 = vpop.f32.mrb[0].mxu0
        %v2154 = vadd.f32 %v1964, %v2153
        %v2155 = vpop.f32.mrb[0].mxu0
        %2156 = vmatprep.mubr.f32.mxu0 %v423
        %2157 = vmatmul.mubr.f32.gmra.mrb[0].mxu0 %v422
        %v2158 = vpop.f32.mrb[0].mxu0
        %v2159 = vadd.f32 %v1969, %v2158
        %v2160 = vpop.f32.mrb[0].mxu0
        %2161 = vmatprep.mubr.f32.mxu0 %v439
        %2162 = vmatmul.mubr.f32.gmra.mrb[0].mxu0 %v438
        %v2163 = vpop.f32.mrb[0].mxu0
        %v2164 = vadd.f32 %v1974, %v2163
        %v2165 = vpop.f32.mrb[0].mxu0
        %2166 = vmatprep.mubr.f32.mxu0 %v455
        %2167 = vmatmul.mubr.f32.gmra.mrb[0].mxu0 %v454
        %v2168 = vpop.f32.mrb[0].mxu0
        %v2169 = vadd.f32 %v1979, %v2168
        %v2170 = vpop.f32.mrb[0].mxu0
        %2171 = vmatprep.mubr.f32.mxu0 %v471
        %2172 = vmatmul.mubr.f32.gmra.mrb[0].mxu0 %v470
        %v2173 = vpop.f32.mrb[0].mxu0
        %v2174 = vadd.f32 %v1984, %v2173
        %v2175 = vpop.f32.mrb[0].mxu0
        %2176 = vmatprep.mubr.f32.mxu0 %v487
        %2177 = vmatmul.mubr.f32.gmra.mrb[0].mxu0 %v486
        %v2178 = vpop.f32.mrb[0].mxu0
        %v2179 = vadd.f32 %v1989, %v2178
        %v2180 = vpop.f32.mrb[0].mxu0
        %2181 = vmatprep.mubr.f32.mxu0 %v503
        %2182 = vmatmul.mubr.f32.gmra.mrb[0].mxu0 %v502
        %v2183 = vpop.f32.mrb[0].mxu0
        %v2184 = vadd.f32 %v1994, %v2183
        %v2185 = vpop.f32.mrb[0].mxu0
        %2186 = vmatprep.mubr.f32.mxu0 %v519
        %2187 = vmatmul.mubr.f32.gmra.mrb[0].mxu0 %v518
        %v2188 = vpop.f32.mrb[0].mxu0
        %v2189 = vadd.f32 %v1999, %v2188
        %v2190 = vpop.f32.mrb[0].mxu0
        %2191 = vmatprep.mubr.f32.mxu0 %v535
        %2192 = vmatmul.mubr.f32.gmra.mrb[0].mxu0 %v534
        %v2193 = vpop.f32.mrb[0].mxu0
        %v2194 = vadd.f32 %v2004, %v2193
        %v2195 = vpop.f32.mrb[0].mxu0
        %2196 = vmatprep.mubr.f32.mxu0 %v551
        %2197 = vmatmul.mubr.f32.gmra.mrb[0].mxu0 %v550
        %v2198 = vpop.f32.mrb[0].mxu0
        %v2199 = vadd.f32 %v2009, %v2198
        %v2200 = vpop.f32.mrb[0].mxu0
        %2201 = vmatprep.mubr.f32.mxu0 %v567
        %2202 = vmatmul.mubr.f32.gmra.mrb[0].mxu0 %v566
        %v2203 = vpop.f32.mrb[0].mxu0
        %v2204 = vadd.f32 %v2014, %v2203
        %v2205 = vpop.f32.mrb[0].mxu0
        %2206 = vmatprep.mubr.f32.mxu0 %v583
        %2207 = vmatmul.mubr.f32.gmra.mrb[0].mxu0 %v582
        %v2208 = vpop.f32.mrb[0].mxu0
        %v2209 = vadd.f32 %v2019, %v2208
        %v2210 = vpop.f32.mrb[0].mxu0
        %2211 = vmatprep.mubr.f32.mxu0 %v599
        %2212 = vmatmul.mubr.f32.gmra.mrb[0].mxu0 %v598
        %v2213 = vpop.f32.mrb[0].mxu0
        %v2214 = vadd.f32 %v2024, %v2213
        %v2215 = vpop.f32.mrb[0].mxu0
        %2216 = vmatprep.mubr.f32.mxu0 %v615
        %2217 = vmatmul.mubr.f32.gmra.mrb[0].mxu0 %v614
        %v2218 = vpop.f32.mrb[0].mxu0
        %v2219 = vadd.f32 %v2029, %v2218
        %v2220 = vpop.f32.mrb[0].mxu0
        %2221 = vmatprep.mubr.f32.mxu0 %v631
        %2222 = vmatmul.mubr.f32.gmra.mrb[0].mxu0 %v630
        %v2223 = vpop.f32.mrb[0].mxu0
        %v2224 = vadd.f32 %v2034, %v2223
        %v2225 = vpop.f32.mrb[0].mxu0
        %2226 = vdwg.mxu0
        %2227 = vmatprep.subr.mxu0 0.0
        %2228 = vmatpush1.msra.mxu0 %v858
        %2229 = vmatprep.subr.mxu0 0.0
        %2230 = vmatpush1.msra.mxu0 %v859
        %2231 = vmatprep.subr.mxu0 0.0
        %2232 = vmatpush1.msra.mxu0 %v860
        %2233 = vmatprep.subr.mxu0 0.0
        %2234 = vmatpush1.msra.mxu0 %v861
        %2235 = vmatprep.subr.mxu0 0.0
        %2236 = vmatpush1.msra.mxu0 %v862
        %2237 = vmatprep.subr.mxu0 0.0
        %2238 = vmatpush1.msra.mxu0 %v863
        %2239 = vmatprep.subr.mxu0 0.0
        %2240 = vmatpush1.msra.mxu0 %v864
        %2241 = vmatprep.subr.mxu0 0.0
        %2242 = vmatpush1.msra.mxu0 %v865
        %2243 = vmatprep.subr.mxu0 0.0
        %2244 = vmatpush1.msra.mxu0 %v866
        %2245 = vmatprep.subr.mxu0 0.0
        %2246 = vmatpush1.msra.mxu0 %v867
        %2247 = vmatprep.subr.mxu0 0.0
        %2248 = vmatpush1.msra.mxu0 %v868
        %2249 = vmatprep.subr.mxu0 0.0
        %2250 = vmatpush1.msra.mxu0 %v869
        %2251 = vmatprep.subr.mxu0 0.0
        %2252 = vmatpush1.msra.mxu0 %v870
        %2253 = vmatprep.subr.mxu0 0.0
        %2254 = vmatpush1.msra.mxu0 %v871
        %2255 = vmatprep.subr.mxu0 0.0
        %2256 = vmatpush1.msra.mxu0 %v872
        %2257 = vmatprep.subr.mxu0 0.0
        %2258 = vmatpush1.msra.mxu0 %v873
        %2259 = vmatprep.subr.mxu0 0.0
        %2260 = vmatpush1.msra.mxu0 %v874
        %2261 = vmatprep.subr.mxu0 0.0
        %2262 = vmatpush1.msra.mxu0 %v875
        %2263 = vmatprep.subr.mxu0 0.0
        %2264 = vmatpush1.msra.mxu0 %v876
        %2265 = vmatprep.subr.mxu0 0.0
        %2266 = vmatpush1.msra.mxu0 %v877
        %2267 = vmatprep.subr.mxu0 0.0
        %2268 = vmatpush1.msra.mxu0 %v878
        %2269 = vmatprep.subr.mxu0 0.0
        %2270 = vmatpush1.msra.mxu0 %v879
        %2271 = vmatprep.subr.mxu0 0.0
        %2272 = vmatpush1.msra.mxu0 %v880
        %2273 = vmatprep.subr.mxu0 0.0
        %2274 = vmatpush1.msra.mxu0 %v881
        %2275 = vmatprep.subr.mxu0 0.0
        %2276 = vmatpush1.msra.mxu0 %v882
        %2277 = vmatprep.subr.mxu0 0.0
        %2278 = vmatpush1.msra.mxu0 %v883
        %2279 = vmatprep.subr.mxu0 0.0
        %2280 = vmatpush1.msra.mxu0 %v884
        %2281 = vmatprep.subr.mxu0 0.0
        %2282 = vmatpush1.msra.mxu0 %v885
        %2283 = vmatprep.subr.mxu0 0.0
        %2284 = vmatpush1.msra.mxu0 %v886
        %2285 = vmatprep.subr.mxu0 0.0
        %2286 = vmatpush1.msra.mxu0 %v887
        %2287 = vmatprep.subr.mxu0 0.0
        %2288 = vmatpush1.msra.mxu0 %v888
        %2289 = vmatprep.subr.mxu0 0.0
        %2290 = vmatpush1.msra.mxu0 %v889
        %2291 = vmatprep.mubr.f32.mxu0 %v249
        %2292 = vmatmul.mubr.f32.gmra.mrb[0].mxu0 %v248
        %v2293 = vpop.f32.mrb[0].mxu0
        %v2294 = vadd.f32 %v2104, %v2293
        %v2295 = vpop.f32.mrb[0].mxu0
        %2296 = vmatprep.mubr.f32.mxu0 %v265
        %2297 = vmatmul.mubr.f32.gmra.mrb[0].mxu0 %v264
        %v2298 = vpop.f32.mrb[0].mxu0
        %v2299 = vadd.f32 %v2109, %v2298
        %v2300 = vpop.f32.mrb[0].mxu0
        %2301 = vmatprep.mubr.f32.mxu0 %v281
        %2302 = vmatmul.mubr.f32.gmra.mrb[0].mxu0 %v280
        %v2303 = vpop.f32.mrb[0].mxu0
        %v2304 = vadd.f32 %v2114, %v2303
        %v2305 = vpop.f32.mrb[0].mxu0
        %2306 = vmatprep.mubr.f32.mxu0 %v297
        %2307 = vmatmul.mubr.f32.gmra.mrb[0].mxu0 %v296
        %v2308 = vpop.f32.mrb[0].mxu0
        %v2309 = vadd.f32 %v2119, %v2308
        %v2310 = vpop.f32.mrb[0].mxu0
        %2311 = vmatprep.mubr.f32.mxu0 %v313
        %2312 = vmatmul.mubr.f32.gmra.mrb[0].mxu0 %v312
        %v2313 = vpop.f32.mrb[0].mxu0
        %v2314 = vadd.f32 %v2124, %v2313
        %v2315 = vpop.f32.mrb[0].mxu0
        %2316 = vmatprep.mubr.f32.mxu0 %v329
        %2317 = vmatmul.mubr.f32.gmra.mrb[0].mxu0 %v328
        %v2318 = vpop.f32.mrb[0].mxu0
        %v2319 = vadd.f32 %v2129, %v2318
        %v2320 = vpop.f32.mrb[0].mxu0
        %2321 = vmatprep.mubr.f32.mxu0 %v345
        %2322 = vmatmul.mubr.f32.gmra.mrb[0].mxu0 %v344
        %v2323 = vpop.f32.mrb[0].mxu0
        %v2324 = vadd.f32 %v2134, %v2323
        %v2325 = vpop.f32.mrb[0].mxu0
        %2326 = vmatprep.mubr.f32.mxu0 %v361
        %2327 = vmatmul.mubr.f32.gmra.mrb[0].mxu0 %v360
        %v2328 = vpop.f32.mrb[0].mxu0
        %v2329 = vadd.f32 %v2139, %v2328
        %v2330 = vpop.f32.mrb[0].mxu0
        %2331 = vmatprep.mubr.f32.mxu0 %v377
        %2332 = vmatmul.mubr.f32.gmra.mrb[0].mxu0 %v376
        %v2333 = vpop.f32.mrb[0].mxu0
        %v2334 = vadd.f32 %v2144, %v2333
        %v2335 = vpop.f32.mrb[0].mxu0
        %2336 = vmatprep.mubr.f32.mxu0 %v393
        %2337 = vmatmul.mubr.f32.gmra.mrb[0].mxu0 %v392
        %v2338 = vpop.f32.mrb[0].mxu0
        %v2339 = vadd.f32 %v2149, %v2338
        %v2340 = vpop.f32.mrb[0].mxu0
        %2341 = vmatprep.mubr.f32.mxu0 %v409
        %2342 = vmatmul.mubr.f32.gmra.mrb[0].mxu0 %v408
        %v2343 = vpop.f32.mrb[0].mxu0
        %v2344 = vadd.f32 %v2154, %v2343
        %v2345 = vpop.f32.mrb[0].mxu0
        %2346 = vmatprep.mubr.f32.mxu0 %v425
        %2347 = vmatmul.mubr.f32.gmra.mrb[0].mxu0 %v424
        %v2348 = vpop.f32.mrb[0].mxu0
        %v2349 = vadd.f32 %v2159, %v2348
        %v2350 = vpop.f32.mrb[0].mxu0
        %2351 = vmatprep.mubr.f32.mxu0 %v441
        %2352 = vmatmul.mubr.f32.gmra.mrb[0].mxu0 %v440
        %v2353 = vpop.f32.mrb[0].mxu0
        %v2354 = vadd.f32 %v2164, %v2353
        %v2355 = vpop.f32.mrb[0].mxu0
        %2356 = vmatprep.mubr.f32.mxu0 %v457
        %2357 = vmatmul.mubr.f32.gmra.mrb[0].mxu0 %v456
        %v2358 = vpop.f32.mrb[0].mxu0
        %v2359 = vadd.f32 %v2169, %v2358
        %v2360 = vpop.f32.mrb[0].mxu0
        %2361 = vmatprep.mubr.f32.mxu0 %v473
        %2362 = vmatmul.mubr.f32.gmra.mrb[0].mxu0 %v472
        %v2363 = vpop.f32.mrb[0].mxu0
        %v2364 = vadd.f32 %v2174, %v2363
        %v2365 = vpop.f32.mrb[0].mxu0
        %2366 = vmatprep.mubr.f32.mxu0 %v489
        %2367 = vmatmul.mubr.f32.gmra.mrb[0].mxu0 %v488
        %v2368 = vpop.f32.mrb[0].mxu0
        %v2369 = vadd.f32 %v2179, %v2368
        %v2370 = vpop.f32.mrb[0].mxu0
        %2371 = vmatprep.mubr.f32.mxu0 %v505
        %2372 = vmatmul.mubr.f32.gmra.mrb[0].mxu0 %v504
        %v2373 = vpop.f32.mrb[0].mxu0
        %v2374 = vadd.f32 %v2184, %v2373
        %v2375 = vpop.f32.mrb[0].mxu0
        %2376 = vmatprep.mubr.f32.mxu0 %v521
        %2377 = vmatmul.mubr.f32.gmra.mrb[0].mxu0 %v520
        %v2378 = vpop.f32.mrb[0].mxu0
        %v2379 = vadd.f32 %v2189, %v2378
        %v2380 = vpop.f32.mrb[0].mxu0
        %2381 = vmatprep.mubr.f32.mxu0 %v537
        %2382 = vmatmul.mubr.f32.gmra.mrb[0].mxu0 %v536
        %v2383 = vpop.f32.mrb[0].mxu0
        %v2384 = vadd.f32 %v2194, %v2383
        %v2385 = vpop.f32.mrb[0].mxu0
        %2386 = vmatprep.mubr.f32.mxu0 %v553
        %2387 = vmatmul.mubr.f32.gmra.mrb[0].mxu0 %v552
        %v2388 = vpop.f32.mrb[0].mxu0
        %v2389 = vadd.f32 %v2199, %v2388
        %v2390 = vpop.f32.mrb[0].mxu0
        %2391 = vmatprep.mubr.f32.mxu0 %v569
        %2392 = vmatmul.mubr.f32.gmra.mrb[0].mxu0 %v568
        %v2393 = vpop.f32.mrb[0].mxu0
        %v2394 = vadd.f32 %v2204, %v2393
        %v2395 = vpop.f32.mrb[0].mxu0
        %2396 = vmatprep.mubr.f32.mxu0 %v585
        %2397 = vmatmul.mubr.f32.gmra.mrb[0].mxu0 %v584
        %v2398 = vpop.f32.mrb[0].mxu0
        %v2399 = vadd.f32 %v2209, %v2398
        %v2400 = vpop.f32.mrb[0].mxu0
        %2401 = vmatprep.mubr.f32.mxu0 %v601
        %2402 = vmatmul.mubr.f32.gmra.mrb[0].mxu0 %v600
        %v2403 = vpop.f32.mrb[0].mxu0
        %v2404 = vadd.f32 %v2214, %v2403
        %v2405 = vpop.f32.mrb[0].mxu0
        %2406 = vmatprep.mubr.f32.mxu0 %v617
        %2407 = vmatmul.mubr.f32.gmra.mrb[0].mxu0 %v616
        %v2408 = vpop.f32.mrb[0].mxu0
        %v2409 = vadd.f32 %v2219, %v2408
        %v2410 = vpop.f32.mrb[0].mxu0
        %2411 = vmatprep.mubr.f32.mxu0 %v633
        %2412 = vmatmul.mubr.f32.gmra.mrb[0].mxu0 %v632
        %v2413 = vpop.f32.mrb[0].mxu0
        %v2414 = vadd.f32 %v2224, %v2413
        %v2415 = vpop.f32.mrb[0].mxu0
        %2416 = vdwg.mxu0
        %2417 = vst [vmem:[%s233] sm:$0xff] %v2294
        %2418 = vst [vmem:[%s233 + $0x8] sm:$0xff] %v2299
        %2419 = vst [vmem:[%s233 + $0x10] sm:$0xff] %v2304
        %2420 = vst [vmem:[%s233 + $0x18] sm:$0xff] %v2309
        %2421 = vst [vmem:[%s233 + $0x20] sm:$0xff] %v2314
        %2422 = vst [vmem:[%s233 + $0x28] sm:$0xff] %v2319
        %2423 = vst [vmem:[%s233 + $0x30] sm:$0xff] %v2324
        %2424 = vst [vmem:[%s233 + $0x38] sm:$0xff] %v2329
        %2425 = vst [vmem:[%s233 + $0x40] sm:$0xff] %v2334
        %2426 = vst [vmem:[%s233 + $0x48] sm:$0xff] %v2339
        %2427 = vst [vmem:[%s233 + $0x50] sm:$0xff] %v2344
        %2428 = vst [vmem:[%s233 + $0x58] sm:$0xff] %v2349
        %2429 = vst [vmem:[%s233 + $0x60] sm:$0xff] %v2354
        %2430 = vst [vmem:[%s233 + $0x68] sm:$0xff] %v2359
        %2431 = vst [vmem:[%s233 + $0x70] sm:$0xff] %v2364
        %2432 = vst [vmem:[%s233 + $0x78] sm:$0xff] %v2369
        %2433 = vst [vmem:[%s233 + $0x80] sm:$0xff] %v2374
        %2434 = vst [vmem:[%s233 + $0x88] sm:$0xff] %v2379
        %2435 = vst [vmem:[%s233 + $0x90] sm:$0xff] %v2384
        %2436 = vst [vmem:[%s233 + $0x98] sm:$0xff] %v2389
        %2437 = vst [vmem:[%s233 + $0xa0] sm:$0xff] %v2394
        %2438 = vst [vmem:[%s233 + $0xa8] sm:$0xff] %v2399
        %2439 = vst [vmem:[%s233 + $0xb0] sm:$0xff] %v2404
        %2440 = vst [vmem:[%s233 + $0xb8] sm:$0xff] %v2409
        %2441 = vst [vmem:[%s233 + $0xc0] sm:$0xf] %v2414
        %s2442 = sand.u32 %s102, 1
        %s2443 = scalar_lea.sflag [#allocation4], %s2442
        %s2444 = sand.u32 %s102, 1
        %s2445 = smul.addr %s2444, 200
        %s2446 = scalar_lea.vmem [#allocation8], %s2445
        // Predicated region
        $region45: #{tpu_custom_call.1} parent=31 // pred_check
          %p2447 = pneg %p112
        $region46: #{tpu_custom_call.1} parent=31 // pred_check_branch
          %2449 = sbr.rel (%p2447) target = $region48
        $region47: #{tpu_custom_call.1} parent=31 // pred_region
          %s2451 = ssub.s32 3200, 3200
          %2452 = vsyncadd %s2443, %s2451
          %s2453 = smul.addr %s21, 128
          %s2454 = scalar_lea.hbm %s3, %s2453
          %s2455 = sshll.u32 %s2446, 4
          %s2456 = int_to_ptr.vmem [resolvable:$true] %s2455
          %2461 = dma.vmem_to_hbm [thread:$0]  %s2456, 3200, %s2454, %s2443, 128, 512, 8
        $region48: #{tpu_custom_call.1} parent=31 // pred_fallthru
          _
      $region32: #{tpu_custom_call.1} parent=5 // pred_fallthru
        _
      %p2462 = scmp.le.s32.totalorder 2, %s16
      // Predicated region
      $region49: #{tpu_custom_call.1} parent=5 // pred_check
        %p2463 = pneg %p2462
      $region50: #{tpu_custom_call.1} parent=5 // pred_check_branch
        %2465 = sbr.rel (%p2463) target = $region52
      $region51: #{tpu_custom_call.1} parent=5 // pred_region
        %s2466 = ssub.s32 %s16, 2
        // Predicated region
        $region53: #{tpu_custom_call.1} parent=51 // pred_check
          %p2467 = pneg %p118
        $region54: #{tpu_custom_call.1} parent=51 // pred_check_branch
          %2469 = sbr.rel (%p2467) target = $region56
        $region55: #{tpu_custom_call.1} parent=51 // pred_region
          %s2470 = sand.u32 %s103, 1
          %s2471 = scalar_lea.sflag [#allocation4], %s2470
          %s2472 = sand.u32 %s103, 1
          %s2473 = smul.addr %s2472, 200
          %s2474 = scalar_lea.vmem [#allocation8], %s2473
          %2475 = dma.done %s2471, 3200
        $region56: #{tpu_custom_call.1} parent=51 // pred_fallthru
          _
      $region52: #{tpu_custom_call.1} parent=5 // pred_fallthru
        _
    $region6: #{tpu_custom_call.1} parent=1 // loop_footer
      %s20 = sadd.s32 1, %s16
    $region7: #{tpu_custom_call.1} parent=1 // loop_footer_branch
      %15 = sbr.rel target = $region3
    $region8: #{tpu_custom_call.1} parent=1 // loop_exit
      _
    %2476 = vsyncpa [#allocation3], 1
    %s2477 = scalar_lea.sflag [#allocation3], 1
    %2478 = vsyncpa %s2477, 1
    %2479 = vsyncpa [#allocation6], 1
    %s2480 = scalar_lea.sflag [#allocation6], 1
    %2481 = vsyncpa %s2480, 1
    %2482 = vsyncpa [#allocation4], 1
    %s2483 = scalar_lea.sflag [#allocation4], 1
    %2484 = vsyncpa %s2483, 1

</llo_original>
